<compile_context>
chip_gen: v5e
topology: v5e:2x2
jax: 0.10.0
libtpu: 0.0.40
codegen_flags: <defaults>
</compile_context>

<pallas_src>
import functools

import jax
import jax.numpy as jnp
from jax import lax
from jax.experimental import pallas as pl
from jax.experimental.pallas import tpu as pltpu

EPS = 1e-5


def _round_up(x, m):
    return -(-x // m) * m


def _padded_bytes(shape, dtype):
    """Approx. VMEM bytes after Mosaic pads the minor two dims to (8, 128)."""
    shape = (1,) * max(0, 2 - len(shape)) + tuple(int(d) for d in shape)
    lead = 1
    for d in shape[:-2]:
        lead *= d
    return (lead * _round_up(shape[-2], 8) * _round_up(shape[-1], 128)
            * jnp.dtype(dtype).itemsize)


def _vmem_budget_bytes():
    """Generation-aware VMEM budget: ~82% of physical (≈105 MiB on v5e/v6e,
    ≈52 MiB on v7x); conservative 52 MiB fallback if the query fails."""
    try:
        phys = int(pltpu.get_tpu_info().vmem_capacity_bytes)
    except Exception:
        phys = 64 << 20
    return int(phys * 0.82)


def _conv_band_vmem_bytes(nb, H, W, C, dt):
    mb = nb * H * W
    f32 = jnp.float32
    total = 0
    total += 4 * _padded_bytes((nb, H, W, C), dt)          # x band + y band (double-buffered)
    total += 2 * _padded_bytes((3, 3 * C, C), dt)          # packed weights
    total += _padded_bytes((nb, H + 2, W + 2, C), dt)      # zero-halo staging scratch
    total += 2 * _padded_bytes((mb, 3 * C), dt)            # two im2col slabs
    total += 3 * _padded_bytes((mb, C), f32)               # acc / pre-act / spill headroom
    total += 8 * _padded_bytes((1, C), f32)                # scale / shift / stats
    return total


def _pick_batch_band(N, H, W, C, dt, vmem_limit):
    """Largest batch band (divisor of N) whose footprint fits the VMEM budget;
    keeps >= 2 grid steps when N > 1 so band i+1 DMA overlaps band i compute."""
    for nb in sorted((d for d in range(1, N + 1) if N % d == 0), reverse=True):
        if N > 1 and nb == N:
            continue
        if _conv_band_vmem_bytes(nb, H, W, C, dt) <= vmem_limit:
            return nb
    # TODO(synk): row-band (spatial) tiling with a 1-row halo for this case.
    raise ValueError("single-image band exceeds the VMEM budget; "
                     "this shape needs row-band tiling")


# --------------------------------------------------------------------------- #
# Kernels
# --------------------------------------------------------------------------- #
def _conv_bn_stats_kernel(x_ref, w_ref, scale_ref, shift_ref,
                          y_ref, stats_ref, pad_ref, slab0_ref, slab1_ref,
                          *, pre_act):
    """One batch band of: [optional BN-affine + ReLU] -> 3x3 conv -> BN partials.

    x_ref     : (nb, H, W, C)      input band (x for conv1, conv1 output for conv2)
    w_ref     : (3, 3*C, C)        packed weights, row dh holds taps (dw, ci)
    scale/shift: (1, C) f32        folded BN affine applied to the input (pre_act)
    y_ref     : (nb, H, W, C)      conv output band
    stats_ref : (1, 2, C) f32      per-band [mean, centred sum-of-squares]
    pad_ref   : (nb, H+2, W+2, C)  zero-halo staging scratch
    slab*_ref : (nb*H*W, 3*C)      im2col slabs (two, alternating per kernel row)
    """
    nb, H, W, C = x_ref.shape
    Hp, Wp = H + 2, W + 2
    Mb = nb * H * W
    f32 = jnp.float32

    # Zero only the 1-pixel halo (interior is fully rewritten below).  Done every
    # band so the kernel stays correct under a "parallel"/megacore grid axis,
    # where a core may never execute program_id == 0.
    pad_ref[:, 0:1, :, :] = jnp.zeros((nb, 1, Wp, C), pad_ref.dtype)
    pad_ref[:, Hp - 1:Hp, :, :] = jnp.zeros((nb, 1, Wp, C), pad_ref.dtype)
    pad_ref[:, :, 0:1, :] = jnp.zeros((nb, Hp, 1, C), pad_ref.dtype)
    pad_ref[:, :, Wp - 1:Wp, :] = jnp.zeros((nb, Hp, 1, C), pad_ref.dtype)

    # Stage the (optionally BN+ReLU transformed) band into the padded buffer.
    if pre_act:
        h = x_ref[...].astype(f32)
        h = h * scale_ref[...].reshape(1, 1, 1, C) + shift_ref[...].reshape(1, 1, 1, C)
        h = jnp.maximum(h, 0.0)
        pad_ref[:, 1:H + 1, 1:W + 1, :] = h.astype(pad_ref.dtype)
    else:
        pad_ref[:, 1:H + 1, 1:W + 1, :] = x_ref[...]

    # 3x3 conv as 3 accumulating MXU matmuls (one per kernel row dh, K = 3*C),
    # with two alternating slabs so the im2col fill (vst-bound) of row dh+1 can
    # overlap the matmul (MXU-bound) of row dh.  MXU operands stay in the
    # native dtype; accumulation is f32.
    slabs = (slab0_ref, slab1_ref)
    acc = jnp.zeros((Mb, C), f32)
    for dh in range(3):
        slab = slabs[dh % 2]
        for dw in range(3):
            slab[:, dw * C:(dw + 1) * C] = (
                pad_ref[:, dh:dh + H, dw:dw + W, :].reshape(Mb, C))
        acc = acc + jnp.dot(slab[...], w_ref[dh], preferred_element_type=f32)

    # Per-band BatchNorm statistics: within-band two-pass (mean, then centred
    # sum of squares).  Bands are combined in the wrapper with the parallel
    # variance formula, so there is no cross-iteration accumulation and the
    # grid axis can safely be "parallel" (megacore-ready).
    mean_b = jnp.sum(acc, axis=0, keepdims=True) * (1.0 / Mb)        # (1, C)
    cent = acc - mean_b
    ssd_b = jnp.sum(cent * cent, axis=0, keepdims=True)              # (1, C)
    stats_ref[:, 0:1, :] = mean_b.reshape(1, 1, C)
    stats_ref[:, 1:2, :] = ssd_b.reshape(1, 1, C)

    # NOTE: for small C this is a masked partial-lane store; padding C to 128
    # would inflate HBM traffic 32x at C=4, so keep it native.
    y_ref[...] = acc.reshape(nb, H, W, C).astype(y_ref.dtype)


def _bn_add_relu_kernel(y_ref, x_ref, scale_ref, shift_ref, out_ref):
    """Pass 3: out = relu(y * scale + shift + x), elementwise over a band."""
    C = out_ref.shape[-1]
    y = y_ref[...].astype(jnp.float32)
    r = x_ref[...].astype(jnp.float32)   # residual kept in native dtype until here
    o = y * scale_ref[...].reshape(1, 1, 1, C) + shift_ref[...].reshape(1, 1, 1, C) + r
    out_ref[...] = jnp.maximum(o, 0.0).astype(out_ref.dtype)


# --------------------------------------------------------------------------- #
# Wrappers
# --------------------------------------------------------------------------- #
def _pack_weights(w_hwio, dtype):
    kh, kw, cin, cout = w_hwio.shape
    assert kh == 3 and kw == 3
    # Row dh holds the 3*cin taps ordered (dw major, ci minor) — matches the slab.
    return w_hwio.reshape(3, 3 * cin, cout).astype(dtype)


def _conv_bn_stats(x4, w3, scale, shift, *, pre_act, nb, vmem_limit):
    N, H, W, C = x4.shape
    bands = N // nb
    mb = nb * H * W
    itemsize = jnp.dtype(x4.dtype).itemsize
    kern = functools.partial(_conv_bn_stats_kernel, pre_act=pre_act)

    y, stats = pl.pallas_call(
        kern,
        grid=(bands,),
        out_shape=(jax.ShapeDtypeStruct((N, H, W, C), x4.dtype),
                   jax.ShapeDtypeStruct((bands, 2, C), jnp.float32)),
        in_specs=[
            pl.BlockSpec((nb, H, W, C), lambda i: (i, 0, 0, 0)),   # streamed band
            pl.BlockSpec((3, 3 * C, C), lambda i: (0, 0, 0)),      # resident weights
            pl.BlockSpec((1, C), lambda i: (0, 0)),                # resident scale
            pl.BlockSpec((1, C), lambda i: (0, 0)),                # resident shift
        ],
        out_specs=(
            pl.BlockSpec((nb, H, W, C), lambda i: (i, 0, 0, 0)),
            pl.BlockSpec((1, 2, C), lambda i: (i, 0, 0)),
        ),
        scratch_shapes=[
            pltpu.VMEM((nb, H + 2, W + 2, C), x4.dtype),   # zero-halo staging
            pltpu.VMEM((mb, 3 * C), x4.dtype),             # im2col slab A
            pltpu.VMEM((mb, 3 * C), x4.dtype),             # im2col slab B
        ],
        compiler_params=pltpu.CompilerParams(
            dimension_semantics=("parallel",),
            vmem_limit_bytes=vmem_limit),
        cost_estimate=pl.CostEstimate(
            flops=2 * N * H * W * 9 * C * C,
            transcendentals=0,
            bytes_accessed=itemsize * (2 * N * H * W * C + 9 * C * C)
            + 8 * bands * C),
    )(x4, w3, scale, shift)
    return y, stats


def _bn_scale_shift(stats, gamma, beta, m_band, m_total):
    """Combine per-band (mean, ssd) with the parallel-variance formula and fold
    BN into a per-channel scale/shift.  Tiny (C,) math, runs as plain JAX."""
    means = stats[:, 0, :]                                   # (bands, C)
    ssds = stats[:, 1, :]                                    # (bands, C)
    mean = jnp.mean(means, axis=0)                           # equal-sized bands
    ssd = jnp.sum(ssds, axis=0) + m_band * jnp.sum((means - mean) ** 2, axis=0)
    var = ssd / m_total                                      # biased, like BatchNorm2d
    scale = gamma.astype(jnp.float32) * lax.rsqrt(var + EPS)
    shift = beta.astype(jnp.float32) - mean * scale
    return scale.reshape(1, -1), shift.reshape(1, -1)


def _bn_add_relu(y4, x4, scale, shift, *, nb, vmem_limit):
    N, H, W, C = x4.shape
    bands = N // nb
    return pl.pallas_call(
        _bn_add_relu_kernel,
        grid=(bands,),
        out_shape=jax.ShapeDtypeStruct((N, H, W, C), x4.dtype),
        in_specs=[
            pl.BlockSpec((nb, H, W, C), lambda i: (i, 0, 0, 0)),
            pl.BlockSpec((nb, H, W, C), lambda i: (i, 0, 0, 0)),
            pl.BlockSpec((1, C), lambda i: (0, 0)),
            pl.BlockSpec((1, C), lambda i: (0, 0)),
        ],
        out_specs=pl.BlockSpec((nb, H, W, C), lambda i: (i, 0, 0, 0)),
        compiler_params=pltpu.CompilerParams(
            dimension_semantics=("parallel",),
            vmem_limit_bytes=vmem_limit),
    )(y4, x4, scale, shift)


def resnet_block_nhwc(x_nhwc, w1_hwio, g1, b1, w2_hwio, g2, b2):
    """x_nhwc: (N,H,W,C); w*_hwio: (3,3,Cin,Cout); g*/b*: (C,)."""
    N, H, W, Cin = x_nhwc.shape
    Cout = w1_hwio.shape[-1]
    assert Cin == Cout, "downsample=None requires in_channel == out_channel"
    C = Cout
    dt = x_nhwc.dtype
    m_total = N * H * W

    vmem_limit = _vmem_budget_bytes()
    nb = _pick_batch_band(N, H, W, C, dt, vmem_limit)
    m_band = nb * H * W

    w1p = _pack_weights(w1_hwio, dt)
    w2p = _pack_weights(w2_hwio, dt)
    ones = jnp.ones((1, C), jnp.float32)
    zeros = jnp.zeros((1, C), jnp.float32)

    # Pass 1: conv1 + per-band BN1 partial stats.
    y1, stats1 = _conv_bn_stats(x_nhwc, w1p, ones, zeros,
                                pre_act=False, nb=nb, vmem_limit=vmem_limit)
    scale1, shift1 = _bn_scale_shift(stats1, g1, b1, m_band, m_total)

    # Pass 2: bn1 + relu + conv2 + per-band BN2 partial stats.
    y2, stats2 = _conv_bn_stats(y1, w2p, scale1, shift1,
                                pre_act=True, nb=nb, vmem_limit=vmem_limit)
    scale2, shift2 = _bn_scale_shift(stats2, g2, b2, m_band, m_total)

    # Pass 3: bn2 + residual add + relu (residual stays in native dtype).
    return _bn_add_relu(y2, x_nhwc, scale2, shift2, nb=nb, vmem_limit=vmem_limit)


def resnet_block_nchw(x_nchw, w1_oihw, g1, b1, w2_oihw, g2, b2):
    """PyTorch-convention entry point (NCHW input, OIHW weights)."""
    x_nhwc = jnp.transpose(x_nchw, (0, 2, 3, 1))
    w1_hwio = jnp.transpose(w1_oihw, (2, 3, 1, 0))
    w2_hwio = jnp.transpose(w2_oihw, (2, 3, 1, 0))
    out_nhwc = resnet_block_nhwc(x_nhwc, w1_hwio, g1, b1, w2_hwio, g2, b2)
    return jnp.transpose(out_nhwc, (0, 3, 1, 2))


def reference_nchw(x, w1, g1, b1, w2, g2, b2):
    """Pure-JAX reference mirroring the PyTorch forward."""
    def conv(a, w):
        return lax.conv_general_dilated(
            a, w, window_strides=(1, 1), padding=((1, 1), (1, 1)),
            dimension_numbers=('NCHW', 'OIHW', 'NCHW'))

    def bn(a, g, b):
        m = jnp.mean(a, axis=(0, 2, 3), keepdims=True)
        v = jnp.mean((a - m) ** 2, axis=(0, 2, 3), keepdims=True)
        return ((a - m) * lax.rsqrt(v + EPS) * g.reshape(1, -1, 1, 1)
                + b.reshape(1, -1, 1, 1))

    o = jnp.maximum(bn(conv(x, w1), g1, b1), 0.0)
    o = bn(conv(o, w2), g2, b2)
    return jnp.maximum(o + x, 0.0)


if __name__ == "__main__":
    N, C, H, W = 2, 4, 16, 16  # in_channel == out_channel (downsample=None)

    key = jax.random.PRNGKey(0)
    kx, kw1, kw2, kg1, kb1, kg2, kb2 = jax.random.split(key, 7)

    x = jax.random.normal(kx, (N, C, H, W), jnp.float32)
    w1 = 0.1 * jax.random.normal(kw1, (C, C, 3, 3), jnp.float32)   # OIHW
    w2 = 0.1 * jax.random.normal(kw2, (C, C, 3, 3), jnp.float32)   # OIHW
    g1 = 1.0 + 0.1 * jax.random.normal(kg1, (C,), jnp.float32)
    b1 = 0.1 * jax.random.normal(kb1, (C,), jnp.float32)
    g2 = 1.0 + 0.1 * jax.random.normal(kg2, (C,), jnp.float32)
    b2 = 0.1 * jax.random.normal(kb2, (C,), jnp.float32)

    out = jax.block_until_ready(resnet_block_nchw(x, w1, g1, b1, w2, g2, b2))
    ref = jax.block_until_ready(reference_nchw(x, w1, g1, b1, w2, g2, b2))

    assert out.shape == (N, C, H, W)
    assert jnp.allclose(out, ref, atol=2e-4, rtol=2e-4), \
        f"max abs err {jnp.max(jnp.abs(out - ref))}"
    print("KERNEL_OK")
</pallas_src>

<mosaic_0001>
module attributes {stable_mosaic.version = 11 : i64} {
  func.func @_conv_bn_stats_kernel(%arg0: i32, %arg1: memref<1x16x16x4xf32, #tpu.memory_space<vmem>>, %arg2: memref<3x12x4xf32, #tpu.memory_space<vmem>>, %arg3: memref<1x4xf32, #tpu.memory_space<vmem>>, %arg4: memref<1x4xf32, #tpu.memory_space<vmem>>, %arg5: memref<1x16x16x4xf32, #tpu.memory_space<vmem>>, %arg6: memref<1x2x4xf32, #tpu.memory_space<vmem>>, %arg7: memref<1x18x18x4xf32, #tpu.memory_space<vmem>>, %arg8: memref<256x12xf32, #tpu.memory_space<vmem>>, %arg9: memref<256x12xf32, #tpu.memory_space<vmem>>) attributes {dimension_semantics = [#tpu.dimension_semantics<parallel>], iteration_bounds = array<i64: 2>, scalar_prefetch = 0 : i64, scratch_operands = 3 : i64, tpu.core_type = #tpu.core_type<tc>, window_params = [{transform_indices = @transform_0, window_bounds = array<i64: 1, 16, 16, 4>}, {pipeline_mode = #tpu.pipeline_mode<synchronous>, transform_indices = @transform_1, window_bounds = array<i64: 3, 12, 4>}, {pipeline_mode = #tpu.pipeline_mode<synchronous>, transform_indices = @transform_2, window_bounds = array<i64: 1, 4>}, {pipeline_mode = #tpu.pipeline_mode<synchronous>, transform_indices = @transform_3, window_bounds = array<i64: 1, 4>}, {transform_indices = @transform_4, window_bounds = array<i64: 1, 16, 16, 4>}, {transform_indices = @transform_5, window_bounds = array<i64: 1, 2, 4>}]} {
    %cst = arith.constant 0.000000e+00 : f32
    %0 = vector.broadcast %cst : f32 to vector<1x1x18x4xf32>
    %c0 = arith.constant 0 : index
    %c0_0 = arith.constant 0 : index
    %c0_1 = arith.constant 0 : index
    %c0_2 = arith.constant 0 : index
    %1 = vector.load %arg7[%c0, %c0_0, %c0_1, %c0_2] : memref<1x18x18x4xf32, #tpu.memory_space<vmem>>, vector<1x1x18x4xf32>
    tpu.vector_store %arg7[%c0, %c0_0, %c0_1, %c0_2], %0 {strides = array<i32>} : memref<1x18x18x4xf32, #tpu.memory_space<vmem>>, vector<1x1x18x4xf32>,
    %cst_3 = arith.constant 0.000000e+00 : f32
    %2 = vector.broadcast %cst_3 : f32 to vector<1x1x18x4xf32>
    %c0_4 = arith.constant 0 : index
    %c17 = arith.constant 17 : index
    %c0_5 = arith.constant 0 : index
    %c0_6 = arith.constant 0 : index
    %3 = vector.load %arg7[%c0_4, %c17, %c0_5, %c0_6] : memref<1x18x18x4xf32, #tpu.memory_space<vmem>>, vector<1x1x18x4xf32>
    tpu.vector_store %arg7[%c0_4, %c17, %c0_5, %c0_6], %2 {strides = array<i32>} : memref<1x18x18x4xf32, #tpu.memory_space<vmem>>, vector<1x1x18x4xf32>,
    %cst_7 = arith.constant 0.000000e+00 : f32
    %4 = vector.broadcast %cst_7 : f32 to vector<1x18x1x4xf32>
    %c0_8 = arith.constant 0 : index
    %c0_9 = arith.constant 0 : index
    %c0_10 = arith.constant 0 : index
    %c0_11 = arith.constant 0 : index
    %5 = vector.load %arg7[%c0_8, %c0_9, %c0_10, %c0_11] : memref<1x18x18x4xf32, #tpu.memory_space<vmem>>, vector<1x18x1x4xf32>
    tpu.vector_store %arg7[%c0_8, %c0_9, %c0_10, %c0_11], %4 {strides = array<i32>} : memref<1x18x18x4xf32, #tpu.memory_space<vmem>>, vector<1x18x1x4xf32>,
    %cst_12 = arith.constant 0.000000e+00 : f32
    %6 = vector.broadcast %cst_12 : f32 to vector<1x18x1x4xf32>
    %c0_13 = arith.constant 0 : index
    %c0_14 = arith.constant 0 : index
    %c17_15 = arith.constant 17 : index
    %c0_16 = arith.constant 0 : index
    %7 = vector.load %arg7[%c0_13, %c0_14, %c17_15, %c0_16] : memref<1x18x18x4xf32, #tpu.memory_space<vmem>>, vector<1x18x1x4xf32>
    tpu.vector_store %arg7[%c0_13, %c0_14, %c17_15, %c0_16], %6 {strides = array<i32>} : memref<1x18x18x4xf32, #tpu.memory_space<vmem>>, vector<1x18x1x4xf32>,
    %c0_17 = arith.constant 0 : index
    %c0_18 = arith.constant 0 : index
    %c0_19 = arith.constant 0 : index
    %c0_20 = arith.constant 0 : index
    %8 = vector.load %arg1[%c0_17, %c0_18, %c0_19, %c0_20] : memref<1x16x16x4xf32, #tpu.memory_space<vmem>>, vector<1x16x16x4xf32>
    %c0_21 = arith.constant 0 : index
    %c1 = arith.constant 1 : index
    %c1_22 = arith.constant 1 : index
    %c0_23 = arith.constant 0 : index
    %9 = vector.load %arg7[%c0_21, %c1, %c1_22, %c0_23] : memref<1x18x18x4xf32, #tpu.memory_space<vmem>>, vector<1x16x16x4xf32>
    tpu.vector_store %arg7[%c0_21, %c1, %c1_22, %c0_23], %8 {strides = array<i32>} : memref<1x18x18x4xf32, #tpu.memory_space<vmem>>, vector<1x16x16x4xf32>,
    %cst_24 = arith.constant 0.000000e+00 : f32
    %10 = vector.broadcast %cst_24 : f32 to vector<256x4xf32>
    %c0_25 = arith.constant 0 : index
    %c0_26 = arith.constant 0 : index
    %c0_27 = arith.constant 0 : index
    %c0_28 = arith.constant 0 : index
    %11 = vector.load %arg7[%c0_25, %c0_26, %c0_27, %c0_28] : memref<1x18x18x4xf32, #tpu.memory_space<vmem>>, vector<1x16x16x4xf32>
    %12 = vector.shape_cast %11 : vector<1x16x16x4xf32> to vector<256x4xf32>
    %c0_29 = arith.constant 0 : index
    %c0_30 = arith.constant 0 : index
    %13 = vector.load %arg8[%c0_29, %c0_30] : memref<256x12xf32, #tpu.memory_space<vmem>>, vector<256x4xf32>
    tpu.vector_store %arg8[%c0_29, %c0_30], %12 {strides = array<i32>} : memref<256x12xf32, #tpu.memory_space<vmem>>, vector<256x4xf32>,
    %c0_31 = arith.constant 0 : index
    %c0_32 = arith.constant 0 : index
    %c1_33 = arith.constant 1 : index
    %c0_34 = arith.constant 0 : index
    %14 = vector.load %arg7[%c0_31, %c0_32, %c1_33, %c0_34] : memref<1x18x18x4xf32, #tpu.memory_space<vmem>>, vector<1x16x16x4xf32>
    %15 = vector.shape_cast %14 : vector<1x16x16x4xf32> to vector<256x4xf32>
    %c0_35 = arith.constant 0 : index
    %c4 = arith.constant 4 : index
    %16 = vector.load %arg8[%c0_35, %c4] : memref<256x12xf32, #tpu.memory_space<vmem>>, vector<256x4xf32>
    tpu.vector_store %arg8[%c0_35, %c4], %15 {strides = array<i32>} : memref<256x12xf32, #tpu.memory_space<vmem>>, vector<256x4xf32>,
    %c0_36 = arith.constant 0 : index
    %c0_37 = arith.constant 0 : index
    %c2 = arith.constant 2 : index
    %c0_38 = arith.constant 0 : index
    %17 = vector.load %arg7[%c0_36, %c0_37, %c2, %c0_38] : memref<1x18x18x4xf32, #tpu.memory_space<vmem>>, vector<1x16x16x4xf32>
    %18 = vector.shape_cast %17 : vector<1x16x16x4xf32> to vector<256x4xf32>
    %c0_39 = arith.constant 0 : index
    %c8 = arith.constant 8 : index
    %19 = vector.load %arg8[%c0_39, %c8] : memref<256x12xf32, #tpu.memory_space<vmem>>, vector<256x4xf32>
    tpu.vector_store %arg8[%c0_39, %c8], %18 {strides = array<i32>} : memref<256x12xf32, #tpu.memory_space<vmem>>, vector<256x4xf32>,
    %c0_40 = arith.constant 0 : index
    %c0_41 = arith.constant 0 : index
    %20 = vector.load %arg8[%c0_40, %c0_41] : memref<256x12xf32, #tpu.memory_space<vmem>>, vector<256x12xf32>
    %c0_42 = arith.constant 0 : index
    %c0_43 = arith.constant 0 : index
    %c0_44 = arith.constant 0 : index
    %21 = vector.load %arg2[%c0_42, %c0_43, %c0_44] : memref<3x12x4xf32, #tpu.memory_space<vmem>>, vector<1x12x4xf32>
    %22 = vector.shape_cast %21 : vector<1x12x4xf32> to vector<12x4xf32>
    %cst_45 = arith.constant dense<0.000000e+00> : vector<256x4xf32>
    %23 = tpu.matmul %20, %22, %cst_45 {dimension_numbers = #tpu.dot_dimension_numbers<[1], [0], [0], [1], [0, 0, 1, 1], [], []>} : vector<256x12xf32>, vector<12x4xf32>, vector<256x4xf32> -> vector<256x4xf32>
    %24 = arith.addf %10, %23 : vector<256x4xf32>
    %c0_46 = arith.constant 0 : index
    %c1_47 = arith.constant 1 : index
    %c0_48 = arith.constant 0 : index
    %c0_49 = arith.constant 0 : index
    %25 = vector.load %arg7[%c0_46, %c1_47, %c0_48, %c0_49] : memref<1x18x18x4xf32, #tpu.memory_space<vmem>>, vector<1x16x16x4xf32>
    %26 = vector.shape_cast %25 : vector<1x16x16x4xf32> to vector<256x4xf32>
    %c0_50 = arith.constant 0 : index
    %c0_51 = arith.constant 0 : index
    %27 = vector.load %arg9[%c0_50, %c0_51] : memref<256x12xf32, #tpu.memory_space<vmem>>, vector<256x4xf32>
    tpu.vector_store %arg9[%c0_50, %c0_51], %26 {strides = array<i32>} : memref<256x12xf32, #tpu.memory_space<vmem>>, vector<256x4xf32>,
    %c0_52 = arith.constant 0 : index
    %c1_53 = arith.constant 1 : index
    %c1_54 = arith.constant 1 : index
    %c0_55 = arith.constant 0 : index
    %28 = vector.load %arg7[%c0_52, %c1_53, %c1_54, %c0_55] : memref<1x18x18x4xf32, #tpu.memory_space<vmem>>, vector<1x16x16x4xf32>
    %29 = vector.shape_cast %28 : vector<1x16x16x4xf32> to vector<256x4xf32>
    %c0_56 = arith.constant 0 : index
    %c4_57 = arith.constant 4 : index
    %30 = vector.load %arg9[%c0_56, %c4_57] : memref<256x12xf32, #tpu.memory_space<vmem>>, vector<256x4xf32>
    tpu.vector_store %arg9[%c0_56, %c4_57], %29 {strides = array<i32>} : memref<256x12xf32, #tpu.memory_space<vmem>>, vector<256x4xf32>,
    %c0_58 = arith.constant 0 : index
    %c1_59 = arith.constant 1 : index
    %c2_60 = arith.constant 2 : index
    %c0_61 = arith.constant 0 : index
    %31 = vector.load %arg7[%c0_58, %c1_59, %c2_60, %c0_61] : memref<1x18x18x4xf32, #tpu.memory_space<vmem>>, vector<1x16x16x4xf32>
    %32 = vector.shape_cast %31 : vector<1x16x16x4xf32> to vector<256x4xf32>
    %c0_62 = arith.constant 0 : index
    %c8_63 = arith.constant 8 : index
    %33 = vector.load %arg9[%c0_62, %c8_63] : memref<256x12xf32, #tpu.memory_space<vmem>>, vector<256x4xf32>
    tpu.vector_store %arg9[%c0_62, %c8_63], %32 {strides = array<i32>} : memref<256x12xf32, #tpu.memory_space<vmem>>, vector<256x4xf32>,
    %c0_64 = arith.constant 0 : index
    %c0_65 = arith.constant 0 : index
    %34 = vector.load %arg9[%c0_64, %c0_65] : memref<256x12xf32, #tpu.memory_space<vmem>>, vector<256x12xf32>
    %c1_66 = arith.constant 1 : index
    %c0_67 = arith.constant 0 : index
    %c0_68 = arith.constant 0 : index
    %35 = vector.load %arg2[%c1_66, %c0_67, %c0_68] : memref<3x12x4xf32, #tpu.memory_space<vmem>>, vector<1x12x4xf32>
    %36 = vector.shape_cast %35 : vector<1x12x4xf32> to vector<12x4xf32>
    %cst_69 = arith.constant dense<0.000000e+00> : vector<256x4xf32>
    %37 = tpu.matmul %34, %36, %cst_69 {dimension_numbers = #tpu.dot_dimension_numbers<[1], [0], [0], [1], [0, 0, 1, 1], [], []>} : vector<256x12xf32>, vector<12x4xf32>, vector<256x4xf32> -> vector<256x4xf32>
    %38 = arith.addf %24, %37 : vector<256x4xf32>
    %c0_70 = arith.constant 0 : index
    %c2_71 = arith.constant 2 : index
    %c0_72 = arith.constant 0 : index
    %c0_73 = arith.constant 0 : index
    %39 = vector.load %arg7[%c0_70, %c2_71, %c0_72, %c0_73] : memref<1x18x18x4xf32, #tpu.memory_space<vmem>>, vector<1x16x16x4xf32>
    %40 = vector.shape_cast %39 : vector<1x16x16x4xf32> to vector<256x4xf32>
    %c0_74 = arith.constant 0 : index
    %c0_75 = arith.constant 0 : index
    %41 = vector.load %arg8[%c0_74, %c0_75] : memref<256x12xf32, #tpu.memory_space<vmem>>, vector<256x4xf32>
    tpu.vector_store %arg8[%c0_74, %c0_75], %40 {strides = array<i32>} : memref<256x12xf32, #tpu.memory_space<vmem>>, vector<256x4xf32>,
    %c0_76 = arith.constant 0 : index
    %c2_77 = arith.constant 2 : index
    %c1_78 = arith.constant 1 : index
    %c0_79 = arith.constant 0 : index
    %42 = vector.load %arg7[%c0_76, %c2_77, %c1_78, %c0_79] : memref<1x18x18x4xf32, #tpu.memory_space<vmem>>, vector<1x16x16x4xf32>
    %43 = vector.shape_cast %42 : vector<1x16x16x4xf32> to vector<256x4xf32>
    %c0_80 = arith.constant 0 : index
    %c4_81 = arith.constant 4 : index
    %44 = vector.load %arg8[%c0_80, %c4_81] : memref<256x12xf32, #tpu.memory_space<vmem>>, vector<256x4xf32>
    tpu.vector_store %arg8[%c0_80, %c4_81], %43 {strides = array<i32>} : memref<256x12xf32, #tpu.memory_space<vmem>>, vector<256x4xf32>,
    %c0_82 = arith.constant 0 : index
    %c2_83 = arith.constant 2 : index
    %c2_84 = arith.constant 2 : index
    %c0_85 = arith.constant 0 : index
    %45 = vector.load %arg7[%c0_82, %c2_83, %c2_84, %c0_85] : memref<1x18x18x4xf32, #tpu.memory_space<vmem>>, vector<1x16x16x4xf32>
    %46 = vector.shape_cast %45 : vector<1x16x16x4xf32> to vector<256x4xf32>
    %c0_86 = arith.constant 0 : index
    %c8_87 = arith.constant 8 : index
    %47 = vector.load %arg8[%c0_86, %c8_87] : memref<256x12xf32, #tpu.memory_space<vmem>>, vector<256x4xf32>
    tpu.vector_store %arg8[%c0_86, %c8_87], %46 {strides = array<i32>} : memref<256x12xf32, #tpu.memory_space<vmem>>, vector<256x4xf32>,
    %c0_88 = arith.constant 0 : index
    %c0_89 = arith.constant 0 : index
    %48 = vector.load %arg8[%c0_88, %c0_89] : memref<256x12xf32, #tpu.memory_space<vmem>>, vector<256x12xf32>
    %c2_90 = arith.constant 2 : index
    %c0_91 = arith.constant 0 : index
    %c0_92 = arith.constant 0 : index
    %49 = vector.load %arg2[%c2_90, %c0_91, %c0_92] : memref<3x12x4xf32, #tpu.memory_space<vmem>>, vector<1x12x4xf32>
    %50 = vector.shape_cast %49 : vector<1x12x4xf32> to vector<12x4xf32>
    %cst_93 = arith.constant dense<0.000000e+00> : vector<256x4xf32>
    %51 = tpu.matmul %48, %50, %cst_93 {dimension_numbers = #tpu.dot_dimension_numbers<[1], [0], [0], [1], [0, 0, 1, 1], [], []>} : vector<256x12xf32>, vector<12x4xf32>, vector<256x4xf32> -> vector<256x4xf32>
    %52 = arith.addf %38, %51 : vector<256x4xf32>
    %cst_94 = arith.constant dense<0.000000e+00> : vector<4xf32>
    %53 = vector.multi_reduction <add>, %52, %cst_94 [0] : vector<256x4xf32> to vector<4xf32>
    %54 = vector.shape_cast %53 : vector<4xf32> to vector<1x4xf32>
    %cst_95 = arith.constant 3.906250e-03 : f32
    %55 = vector.broadcast %cst_95 : f32 to vector<1x4xf32>
    %56 = arith.mulf %54, %55 : vector<1x4xf32>
    %57 = vector.broadcast %56 : vector<1x4xf32> to vector<256x4xf32>
    %58 = arith.subf %52, %57 : vector<256x4xf32>
    %59 = arith.mulf %58, %58 : vector<256x4xf32>
    %cst_96 = arith.constant dense<0.000000e+00> : vector<4xf32>
    %60 = vector.multi_reduction <add>, %59, %cst_96 [0] : vector<256x4xf32> to vector<4xf32>
    %61 = vector.shape_cast %60 : vector<4xf32> to vector<1x4xf32>
    %62 = vector.shape_cast %56 : vector<1x4xf32> to vector<1x1x4xf32>
    %c0_97 = arith.constant 0 : index
    %c0_98 = arith.constant 0 : index
    %c0_99 = arith.constant 0 : index
    %63 = vector.load %arg6[%c0_97, %c0_98, %c0_99] : memref<1x2x4xf32, #tpu.memory_space<vmem>>, vector<1x1x4xf32>
    tpu.vector_store %arg6[%c0_97, %c0_98, %c0_99], %62 {strides = array<i32>} : memref<1x2x4xf32, #tpu.memory_space<vmem>>, vector<1x1x4xf32>,
    %64 = vector.shape_cast %61 : vector<1x4xf32> to vector<1x1x4xf32>
    %c0_100 = arith.constant 0 : index
    %c1_101 = arith.constant 1 : index
    %c0_102 = arith.constant 0 : index
    %65 = vector.load %arg6[%c0_100, %c1_101, %c0_102] : memref<1x2x4xf32, #tpu.memory_space<vmem>>, vector<1x1x4xf32>
    tpu.vector_store %arg6[%c0_100, %c1_101, %c0_102], %64 {strides = array<i32>} : memref<1x2x4xf32, #tpu.memory_space<vmem>>, vector<1x1x4xf32>,
    %66 = vector.shape_cast %52 : vector<256x4xf32> to vector<1x16x16x4xf32>
    %c0_103 = arith.constant 0 : index
    %c0_104 = arith.constant 0 : index
    %c0_105 = arith.constant 0 : index
    %c0_106 = arith.constant 0 : index
    %67 = vector.load %arg5[%c0_103, %c0_104, %c0_105, %c0_106] : memref<1x16x16x4xf32, #tpu.memory_space<vmem>>, vector<1x16x16x4xf32>
    tpu.vector_store %arg5[%c0_103, %c0_104, %c0_105, %c0_106], %66 {strides = array<i32>} : memref<1x16x16x4xf32, #tpu.memory_space<vmem>>, vector<1x16x16x4xf32>,
    return
  }
  func.func @transform_0(%arg0: i32) -> (i32, i32, i32, i32) {
    %c0_i32 = arith.constant 0 : i32
    %c0_i32_0 = arith.constant 0 : i32
    %c0_i32_1 = arith.constant 0 : i32
    %c0_i32_2 = arith.constant 0 : i32
    return %arg0, %c0_i32, %c0_i32_0, %c0_i32_1 : i32, i32, i32, i32
  }
  func.func @transform_1(%arg0: i32) -> (i32, i32, i32) {
    %c0_i32 = arith.constant 0 : i32
    %c0_i32_0 = arith.constant 0 : i32
    %c0_i32_1 = arith.constant 0 : i32
    %c0_i32_2 = arith.constant 0 : i32
    return %c0_i32, %c0_i32_0, %c0_i32_1 : i32, i32, i32
  }
  func.func @transform_2(%arg0: i32) -> (i32, i32) {
    %c0_i32 = arith.constant 0 : i32
    %c0_i32_0 = arith.constant 0 : i32
    %c0_i32_1 = arith.constant 0 : i32
    return %c0_i32, %c0_i32_0 : i32, i32
  }
  func.func @transform_3(%arg0: i32) -> (i32, i32) {
    %c0_i32 = arith.constant 0 : i32
    %c0_i32_0 = arith.constant 0 : i32
    %c0_i32_1 = arith.constant 0 : i32
    return %c0_i32, %c0_i32_0 : i32, i32
  }
  func.func @transform_4(%arg0: i32) -> (i32, i32, i32, i32) {
    %c0_i32 = arith.constant 0 : i32
    %c0_i32_0 = arith.constant 0 : i32
    %c0_i32_1 = arith.constant 0 : i32
    %c0_i32_2 = arith.constant 0 : i32
    return %arg0, %c0_i32, %c0_i32_0, %c0_i32_1 : i32, i32, i32, i32
  }
  func.func @transform_5(%arg0: i32) -> (i32, i32, i32) {
    %c0_i32 = arith.constant 0 : i32
    %c0_i32_0 = arith.constant 0 : i32
    %c0_i32_1 = arith.constant 0 : i32
    return %arg0, %c0_i32, %c0_i32_0 : i32, i32, i32
  }
}

</mosaic_0001>

<llo_original>
// kernel: tpu_custom_call.1
$region0: #{tpu_custom_call.1}
  #allocation0 [shape = 'u32[]', space=smem, size = 0x4, offset = 0x4, fixed_abs, tag = 'smem constant byte address 0x4 - core index']
  #allocation1 [shape = 'u32[72,128]{1,0:T(1,128)}', space=vmem, size = 0x9000, scoped, tag = 'internal scratch']
  #allocation2 [shape = 'f32[1,18,18,4]{3,2,1,0:T(8,128)}', space=vmem, size = 0x36000, scoped, tag = 'scratch operand']
  #allocation3 [shape = 'f32[256,12]{1,0:T(8,128)}', space=vmem, size = 0x20000, scoped, tag = 'scratch operand']
  #allocation4 [shape = 'f32[256,12]{1,0:T(8,128)}', space=vmem, size = 0x20000, scoped, tag = 'scratch operand']
  %s0 = inlined_call_operand.vmem [shape: f32[2,16,16,4], index: 0, kind: input, shape index: {}]
  %s1 = inlined_call_operand.vmem [shape: f32[3,12,4], index: 1, kind: input, shape index: {}]
  %s2 = inlined_call_operand.vmem [shape: f32[1,4], index: 2, kind: input, shape index: {}]
  %s3 = inlined_call_operand.vmem [shape: f32[1,4], index: 3, kind: input, shape index: {}]
  %s4 = inlined_call_operand.vmem [shape: f32[2,16,16,4], index: 4, kind: output, shape index: {0}]
  %s5 = inlined_call_operand.hbm [shape: f32[2,2,4], index: 5, kind: output, shape index: {1}]
  %6 = xla_tuple %s4, %s5
  %s7 = sld [smem:[#allocation0]]
  $region57: #{tpu_custom_call.1} parent=0
    _
  %s9 = ssub.s32 1, %s7
  %s10 = scalar_select 0, %s9, %s7
  $region1: #{tpu_custom_call.1} parent=0
    #allocation5 [shape = 'u8[2048]{0}', space=vmem, size = 0x800, scoped, tag = 'output window, operand 1']
    #allocation6 [shape = 's32[2]{0}', space=sflag, size = 0x8, scoped, tag = 'scoped memory for tpu_custom_call.1']
    %11 = vsyncpa [#allocation6], 0
    %s12 = scalar_lea.sflag [#allocation6], 1
    %13 = vsyncpa %s12, 0
    loop: start=0, step=1, limit=4
    $region2: #{tpu_custom_call.1} parent=1 // loop_pre_header
      _
    $region3: #{tpu_custom_call.1} parent=1 // loop_header
      %s15 = sphi 0, %s19
      %p16 = scmp.ge.s32.totalorder %s15, 4
      %s25 = sphi 0, %s27
      %s28 = sphi 0, %s25
      %s29 = sphi 0, %s28
      %s45 = sphi 0, %s29
      %s49 = sphi 0, %s49
      %s51 = sphi 0, %s49
      %s52 = sphi 0, %s51
      %s66 = sphi 0, %s52
      %s70 = sphi 0, %s70
      %s72 = sphi 0, %s70
      %s73 = sphi 0, %s72
      %s87 = sphi 0, %s73
      %s91 = sphi 0, %s91
      %s93 = sphi 0, %s91
      %s94 = sphi 0, %s93
      %s108 = sphi 0, %s94
      %s114 = sphi 0, %s116
      %s117 = sphi 0, %s114
      %s118 = sphi 0, %s117
      %s134 = sphi 0, %s118
      %s140 = sphi 0, %s142
      %s143 = sphi 0, %s140
      %s144 = sphi 0, %s143
      %s160 = sphi 0, %s144
    $region4: #{tpu_custom_call.1} parent=1 // loop_header_branch
      %18 = sbr.rel (%p16) target = $region8
    $region5: #{tpu_custom_call.1} parent=1 // loop_body
      %s20 = ssub.s32 %s15, 1
      %s21 = ssub.s32 %s15, 2
      %s22 = sadd.s32 %s15, 1
      %s23 = ssub.s32 %s15, %s22
      %p24 = scmp.eq.s32.totalorder %s23, 0
      %s26 = sadd.s32 %s25, 1
      %s27 = scalar_select %p24, %s25, %s26
      %p30 = pneg %p24
      %p31 = scmp.eq.s32.totalorder %s15, 1
      %p32 = por %p30, %p31
      %p33 = scmp.ne.s32.totalorder %s25, %s28
      %p34 = scmp.eq.s32.totalorder %s15, 0
      %p35 = por %p33, %p34
      %p36 = scmp.ne.s32.totalorder %s25, %s28
      %p37 = scmp.eq.s32.totalorder %s20, 1
      %p38 = por %p36, %p37
      %p39 = scmp.ne.s32.totalorder %s28, %s29
      %p40 = scmp.eq.s32.totalorder %s20, 0
      %p41 = por %p39, %p40
      %p42 = scmp.ne.s32.totalorder %s28, %s29
      %p43 = scmp.eq.s32.totalorder %s21, 1
      %p44 = por %p42, %p43
      %p46 = scmp.ne.s32.totalorder %s29, %s45
      %p47 = scmp.eq.s32.totalorder %s21, 0
      %p48 = por %p46, %p47
      %s50 = sadd.s32 %s49, 1
      %p53 = scmp.eq.s32.totalorder %s15, 1
      %p54 = scmp.ne.s32.totalorder %s49, %s51
      %p55 = scmp.eq.s32.totalorder %s15, 0
      %p56 = por %p54, %p55
      %p57 = scmp.ne.s32.totalorder %s49, %s51
      %p58 = scmp.eq.s32.totalorder %s20, 1
      %p59 = por %p57, %p58
      %p60 = scmp.ne.s32.totalorder %s51, %s52
      %p61 = scmp.eq.s32.totalorder %s20, 0
      %p62 = por %p60, %p61
      %p63 = scmp.ne.s32.totalorder %s51, %s52
      %p64 = scmp.eq.s32.totalorder %s21, 1
      %p65 = por %p63, %p64
      %p67 = scmp.ne.s32.totalorder %s52, %s66
      %p68 = scmp.eq.s32.totalorder %s21, 0
      %p69 = por %p67, %p68
      %s71 = sadd.s32 %s70, 1
      %p74 = scmp.eq.s32.totalorder %s15, 1
      %p75 = scmp.ne.s32.totalorder %s70, %s72
      %p76 = scmp.eq.s32.totalorder %s15, 0
      %p77 = por %p75, %p76
      %p78 = scmp.ne.s32.totalorder %s70, %s72
      %p79 = scmp.eq.s32.totalorder %s20, 1
      %p80 = por %p78, %p79
      %p81 = scmp.ne.s32.totalorder %s72, %s73
      %p82 = scmp.eq.s32.totalorder %s20, 0
      %p83 = por %p81, %p82
      %p84 = scmp.ne.s32.totalorder %s72, %s73
      %p85 = scmp.eq.s32.totalorder %s21, 1
      %p86 = por %p84, %p85
      %p88 = scmp.ne.s32.totalorder %s73, %s87
      %p89 = scmp.eq.s32.totalorder %s21, 0
      %p90 = por %p88, %p89
      %s92 = sadd.s32 %s91, 1
      %p95 = scmp.eq.s32.totalorder %s15, 1
      %p96 = scmp.ne.s32.totalorder %s91, %s93
      %p97 = scmp.eq.s32.totalorder %s15, 0
      %p98 = por %p96, %p97
      %p99 = scmp.ne.s32.totalorder %s91, %s93
      %p100 = scmp.eq.s32.totalorder %s20, 1
      %p101 = por %p99, %p100
      %p102 = scmp.ne.s32.totalorder %s93, %s94
      %p103 = scmp.eq.s32.totalorder %s20, 0
      %p104 = por %p102, %p103
      %p105 = scmp.ne.s32.totalorder %s93, %s94
      %p106 = scmp.eq.s32.totalorder %s21, 1
      %p107 = por %p105, %p106
      %p109 = scmp.ne.s32.totalorder %s94, %s108
      %p110 = scmp.eq.s32.totalorder %s21, 0
      %p111 = por %p109, %p110
      %s112 = ssub.s32 %s15, %s22
      %p113 = scmp.eq.s32.totalorder %s112, 0
      %s115 = sadd.s32 %s114, 1
      %s116 = scalar_select %p113, %s114, %s115
      %p119 = pneg %p113
      %p120 = scmp.eq.s32.totalorder %s15, 1
      %p121 = por %p119, %p120
      %p122 = scmp.ne.s32.totalorder %s114, %s117
      %p123 = scmp.eq.s32.totalorder %s15, 0
      %p124 = por %p122, %p123
      %p125 = scmp.ne.s32.totalorder %s114, %s117
      %p126 = scmp.eq.s32.totalorder %s20, 1
      %p127 = por %p125, %p126
      %p128 = scmp.ne.s32.totalorder %s117, %s118
      %p129 = scmp.eq.s32.totalorder %s20, 0
      %p130 = por %p128, %p129
      %p131 = scmp.ne.s32.totalorder %s117, %s118
      %p132 = scmp.eq.s32.totalorder %s21, 1
      %p133 = por %p131, %p132
      %p135 = scmp.ne.s32.totalorder %s118, %s134
      %p136 = scmp.eq.s32.totalorder %s21, 0
      %p137 = por %p135, %p136
      %s138 = ssub.s32 %s15, %s22
      %p139 = scmp.eq.s32.totalorder %s138, 0
      %s141 = sadd.s32 %s140, 1
      %s142 = scalar_select %p139, %s140, %s141
      %p145 = pneg %p139
      %p146 = scmp.eq.s32.totalorder %s15, 1
      %p147 = por %p145, %p146
      %p148 = scmp.ne.s32.totalorder %s140, %s143
      %p149 = scmp.eq.s32.totalorder %s15, 0
      %p150 = por %p148, %p149
      %p151 = scmp.ne.s32.totalorder %s140, %s143
      %p152 = scmp.eq.s32.totalorder %s20, 1
      %p153 = por %p151, %p152
      %p154 = scmp.ne.s32.totalorder %s143, %s144
      %p155 = scmp.eq.s32.totalorder %s20, 0
      %p156 = por %p154, %p155
      %p157 = scmp.ne.s32.totalorder %s143, %s144
      %p158 = scmp.eq.s32.totalorder %s21, 1
      %p159 = por %p157, %p158
      %p161 = scmp.ne.s32.totalorder %s144, %s160
      %p162 = scmp.eq.s32.totalorder %s21, 0
      %p163 = por %p161, %p162
      %p164 = scmp.le.s32.totalorder 1, %s15
      %p165 = scmp.lt.s32.totalorder %s15, 3
      %p166 = pnand %p164, %p165
      %p167 = pneg %p166
      // Predicated region
      $region9: #{tpu_custom_call.1} parent=5 // pred_check
        _
      $region10: #{tpu_custom_call.1} parent=5 // pred_check_branch
        %169 = sbr.rel (%p166) target = $region12
      $region11: #{tpu_custom_call.1} parent=5 // pred_region
        %s170 = ssub.s32 %s15, 1
        // Predicated region
        $region13: #{tpu_custom_call.1} parent=11 // pred_check
          %p171 = pneg %p62
        $region14: #{tpu_custom_call.1} parent=11 // pred_check_branch
          %173 = sbr.rel (%p171) target = $region16
        $region15: #{tpu_custom_call.1} parent=11 // pred_region
          _
        $region16: #{tpu_custom_call.1} parent=11 // pred_fallthru
          _
        // Predicated region
        $region17: #{tpu_custom_call.1} parent=11 // pred_check
          %p174 = pneg %p83
        $region18: #{tpu_custom_call.1} parent=11 // pred_check_branch
          %176 = sbr.rel (%p174) target = $region20
        $region19: #{tpu_custom_call.1} parent=11 // pred_region
          _
        $region20: #{tpu_custom_call.1} parent=11 // pred_fallthru
          _
        // Predicated region
        $region21: #{tpu_custom_call.1} parent=11 // pred_check
          %p177 = pneg %p104
        $region22: #{tpu_custom_call.1} parent=11 // pred_check_branch
          %179 = sbr.rel (%p177) target = $region24
        $region23: #{tpu_custom_call.1} parent=11 // pred_region
          _
        $region24: #{tpu_custom_call.1} parent=11 // pred_fallthru
          _
      $region12: #{tpu_custom_call.1} parent=5 // pred_fallthru
        _
      %p180 = scmp.lt.s32.totalorder %s15, 2
      // Predicated region
      $region25: #{tpu_custom_call.1} parent=5 // pred_check
        %p181 = pneg %p180
      $region26: #{tpu_custom_call.1} parent=5 // pred_check_branch
        %183 = sbr.rel (%p181) target = $region28
      $region27: #{tpu_custom_call.1} parent=5 // pred_region
        // Predicated region
        $region29: #{tpu_custom_call.1} parent=27 // pred_check
          %p184 = pneg %p35
        $region30: #{tpu_custom_call.1} parent=27 // pred_check_branch
          %186 = sbr.rel (%p184) target = $region32
        $region31: #{tpu_custom_call.1} parent=27 // pred_region
          %p187 = scmp.lt.s32.totalorder %s15, 1
          %s188 = scalar_select %p187, %s15, 1
          %s189 = smul.addr %s188, 32
          %s190 = smul.addr %s189, 8
          %s191 = scalar_lea.vmem %s0, %s190
        $region32: #{tpu_custom_call.1} parent=27 // pred_fallthru
          _
      $region28: #{tpu_custom_call.1} parent=5 // pred_fallthru
        _
      %p192 = scmp.le.s32.totalorder 1, %s15
      %p193 = scmp.lt.s32.totalorder %s15, 3
      %p194 = pnand %p192, %p193
      %p195 = pneg %p194
      // Predicated region
      $region33: #{tpu_custom_call.1} parent=5 // pred_check
        _
      $region34: #{tpu_custom_call.1} parent=5 // pred_check_branch
        %197 = sbr.rel (%p194) target = $region36
      $region35: #{tpu_custom_call.1} parent=5 // pred_region
        %s198 = ssub.s32 %s15, 1
        %p199 = scmp.lt.s32.totalorder %s20, 1
        %s200 = scalar_select %p199, %s20, 1
        %s201 = smul.addr %s200, 32
        %s202 = smul.addr %s201, 8
        %s203 = scalar_lea.vmem %s0, %s202
        %p204 = pneg %p41
        %p205 = pneg %p38
        %p206 = pneg %p62
        %p207 = pneg %p59
        %p208 = pneg %p83
        %p209 = pneg %p80
        %p210 = pneg %p104
        %p211 = pneg %p101
        %p212 = pneg %p130
        %p213 = pneg %p127
        %p214 = scmp.lt.s32.totalorder %s20, 1
        %s215 = scalar_select %p214, %s20, 1
        %s216 = smul.addr %s215, 32
        %s217 = smul.addr %s216, 8
        %s218 = scalar_lea.vmem %s4, %s217
        %p219 = pneg %p156
        %p220 = pneg %p153
        %s221 = sand.u32 %s143, 1
        %s222 = scalar_lea.sflag [#allocation6], %s221
        %s223 = sand.u32 %s143, 1
        %s224 = smul.addr %s223, 2
        %s225 = scalar_lea.vmem [#allocation5], %s224
        %p226 = scmp.lt.s32.totalorder %s20, 1
        %s227 = scalar_select %p226, %s20, 1
        %s228 = smul.addr %s227, 32
        %s229 = smul.addr %s228, 8
        %s230 = scalar_lea.vmem %s0, %s229
        %p231 = scmp.lt.s32.totalorder %s20, 1
        %s232 = scalar_select %p231, %s20, 1
        %s233 = smul.addr %s232, 32
        %s234 = smul.addr %s233, 8
        %s235 = scalar_lea.vmem %s4, %s234
        %vm236 = vcmask 31744
        %237 = vst.msk [vmem:[#allocation2] sm:$0xff] %vm236, 0.0
        %238 = vst.msk [vmem:[#allocation2 + $0x8] sm:$0xff] %vm236, 0.0
        %vm239 = vcmask 25600
        %240 = vst.msk [vmem:[#allocation2 + $0x10] sm:$0x3] %vm239, 0.0
        %s241 = scalar_lea.vmem [#allocation2], 408
        %242 = vst.msk [vmem:[%s241] sm:$0xff] %vm236, 0.0
        %243 = vst.msk [vmem:[%s241 + $0x8] sm:$0xff] %vm236, 0.0
        %244 = vst.msk [vmem:[%s241 + $0x10] sm:$0x3] %vm239, 0.0
        %vm245 = vcmask 24576
        %246 = vst.msk [vmem:[#allocation2] sm:$0x1] %vm245, 0.0
        %247 = vst.msk [vmem:[#allocation2 + $0x18] sm:$0x1] %vm245, 0.0
        %248 = vst.msk [vmem:[#allocation2 + $0x30] sm:$0x1] %vm245, 0.0
        %249 = vst.msk [vmem:[#allocation2 + $0x48] sm:$0x1] %vm245, 0.0
        %250 = vst.msk [vmem:[#allocation2 + $0x60] sm:$0x1] %vm245, 0.0
        %251 = vst.msk [vmem:[#allocation2 + $0x78] sm:$0x1] %vm245, 0.0
        %252 = vst.msk [vmem:[#allocation2 + $0x90] sm:$0x1] %vm245, 0.0
        %253 = vst.msk [vmem:[#allocation2 + $0xa8] sm:$0x1] %vm245, 0.0
        %254 = vst.msk [vmem:[#allocation2 + $0xc0] sm:$0x1] %vm245, 0.0
        %255 = vst.msk [vmem:[#allocation2 + $0xd8] sm:$0x1] %vm245, 0.0
        %256 = vst.msk [vmem:[#allocation2 + $0xf0] sm:$0x1] %vm245, 0.0
        %257 = vst.msk [vmem:[#allocation2 + $0x108] sm:$0x1] %vm245, 0.0
        %258 = vst.msk [vmem:[#allocation2 + $0x120] sm:$0x1] %vm245, 0.0
        %259 = vst.msk [vmem:[#allocation2 + $0x138] sm:$0x1] %vm245, 0.0
        %260 = vst.msk [vmem:[#allocation2 + $0x150] sm:$0x1] %vm245, 0.0
        %261 = vst.msk [vmem:[#allocation2 + $0x168] sm:$0x1] %vm245, 0.0
        %262 = vst.msk [vmem:[#allocation2 + $0x180] sm:$0x1] %vm245, 0.0
        %263 = vst.msk [vmem:[#allocation2 + $0x198] sm:$0x1] %vm245, 0.0
        %264 = vst.msk [vmem:[#allocation2 + $0x11] sm:$0x1] %vm245, 0.0
        %265 = vst.msk [vmem:[#allocation2 + $0x29] sm:$0x1] %vm245, 0.0
        %266 = vst.msk [vmem:[#allocation2 + $0x41] sm:$0x1] %vm245, 0.0
        %267 = vst.msk [vmem:[#allocation2 + $0x59] sm:$0x1] %vm245, 0.0
        %268 = vst.msk [vmem:[#allocation2 + $0x71] sm:$0x1] %vm245, 0.0
        %269 = vst.msk [vmem:[#allocation2 + $0x89] sm:$0x1] %vm245, 0.0
        %270 = vst.msk [vmem:[#allocation2 + $0xa1] sm:$0x1] %vm245, 0.0
        %271 = vst.msk [vmem:[#allocation2 + $0xb9] sm:$0x1] %vm245, 0.0
        %272 = vst.msk [vmem:[#allocation2 + $0xd1] sm:$0x1] %vm245, 0.0
        %273 = vst.msk [vmem:[#allocation2 + $0xe9] sm:$0x1] %vm245, 0.0
        %274 = vst.msk [vmem:[#allocation2 + $0x101] sm:$0x1] %vm245, 0.0
        %275 = vst.msk [vmem:[#allocation2 + $0x119] sm:$0x1] %vm245, 0.0
        %276 = vst.msk [vmem:[#allocation2 + $0x131] sm:$0x1] %vm245, 0.0
        %277 = vst.msk [vmem:[#allocation2 + $0x149] sm:$0x1] %vm245, 0.0
        %278 = vst.msk [vmem:[#allocation2 + $0x161] sm:$0x1] %vm245, 0.0
        %279 = vst.msk [vmem:[#allocation2 + $0x179] sm:$0x1] %vm245, 0.0
        %280 = vst.msk [vmem:[#allocation2 + $0x191] sm:$0x1] %vm245, 0.0
        %281 = vst.msk [vmem:[#allocation2 + $0x1a9] sm:$0x1] %vm245, 0.0
        %v282 = vld [vmem:[%s230] sm:$0xff]
        %v283 = vld [vmem:[%s230 + $0x8] sm:$0xff]
        %v284 = vld [vmem:[%s230 + $0x10] sm:$0xff]
        %v285 = vld [vmem:[%s230 + $0x18] sm:$0xff]
        %v286 = vld [vmem:[%s230 + $0x20] sm:$0xff]
        %v287 = vld [vmem:[%s230 + $0x28] sm:$0xff]
        %v288 = vld [vmem:[%s230 + $0x30] sm:$0xff]
        %v289 = vld [vmem:[%s230 + $0x38] sm:$0xff]
        %v290 = vld [vmem:[%s230 + $0x40] sm:$0xff]
        %v291 = vld [vmem:[%s230 + $0x48] sm:$0xff]
        %v292 = vld [vmem:[%s230 + $0x50] sm:$0xff]
        %v293 = vld [vmem:[%s230 + $0x58] sm:$0xff]
        %v294 = vld [vmem:[%s230 + $0x60] sm:$0xff]
        %v295 = vld [vmem:[%s230 + $0x68] sm:$0xff]
        %v296 = vld [vmem:[%s230 + $0x70] sm:$0xff]
        %v297 = vld [vmem:[%s230 + $0x78] sm:$0xff]
        %v298 = vld [vmem:[%s230 + $0x80] sm:$0xff]
        %v299 = vld [vmem:[%s230 + $0x88] sm:$0xff]
        %v300 = vld [vmem:[%s230 + $0x90] sm:$0xff]
        %v301 = vld [vmem:[%s230 + $0x98] sm:$0xff]
        %v302 = vld [vmem:[%s230 + $0xa0] sm:$0xff]
        %v303 = vld [vmem:[%s230 + $0xa8] sm:$0xff]
        %v304 = vld [vmem:[%s230 + $0xb0] sm:$0xff]
        %v305 = vld [vmem:[%s230 + $0xb8] sm:$0xff]
        %v306 = vld [vmem:[%s230 + $0xc0] sm:$0xff]
        %v307 = vld [vmem:[%s230 + $0xc8] sm:$0xff]
        %v308 = vld [vmem:[%s230 + $0xd0] sm:$0xff]
        %v309 = vld [vmem:[%s230 + $0xd8] sm:$0xff]
        %v310 = vld [vmem:[%s230 + $0xe0] sm:$0xff]
        %v311 = vld [vmem:[%s230 + $0xe8] sm:$0xff]
        %v312 = vld [vmem:[%s230 + $0xf0] sm:$0xff]
        %v313 = vld [vmem:[%s230 + $0xf8] sm:$0xff]
        %s314 = scalar_lea.vmem [#allocation2], 24
        %315 = vst.msk [vmem:[%s314 + $0x1] sm:$0xff] %vm236, %v282
        %316 = vst.msk [vmem:[%s314 + $0x9] sm:$0xff] %vm236, %v283
        %317 = vst.msk [vmem:[%s314 + $0x19] sm:$0xff] %vm236, %v284
        %318 = vst.msk [vmem:[%s314 + $0x21] sm:$0xff] %vm236, %v285
        %319 = vst.msk [vmem:[%s314 + $0x31] sm:$0xff] %vm236, %v286
        %320 = vst.msk [vmem:[%s314 + $0x39] sm:$0xff] %vm236, %v287
        %321 = vst.msk [vmem:[%s314 + $0x49] sm:$0xff] %vm236, %v288
        %322 = vst.msk [vmem:[%s314 + $0x51] sm:$0xff] %vm236, %v289
        %323 = vst.msk [vmem:[%s314 + $0x61] sm:$0xff] %vm236, %v290
        %324 = vst.msk [vmem:[%s314 + $0x69] sm:$0xff] %vm236, %v291
        %325 = vst.msk [vmem:[%s314 + $0x79] sm:$0xff] %vm236, %v292
        %326 = vst.msk [vmem:[%s314 + $0x81] sm:$0xff] %vm236, %v293
        %327 = vst.msk [vmem:[%s314 + $0x91] sm:$0xff] %vm236, %v294
        %328 = vst.msk [vmem:[%s314 + $0x99] sm:$0xff] %vm236, %v295
        %329 = vst.msk [vmem:[%s314 + $0xa9] sm:$0xff] %vm236, %v296
        %330 = vst.msk [vmem:[%s314 + $0xb1] sm:$0xff] %vm236, %v297
        %331 = vst.msk [vmem:[%s314 + $0xc1] sm:$0xff] %vm236, %v298
        %332 = vst.msk [vmem:[%s314 + $0xc9] sm:$0xff] %vm236, %v299
        %333 = vst.msk [vmem:[%s314 + $0xd9] sm:$0xff] %vm236, %v300
        %334 = vst.msk [vmem:[%s314 + $0xe1] sm:$0xff] %vm236, %v301
        %335 = vst.msk [vmem:[%s314 + $0xf1] sm:$0xff] %vm236, %v302
        %336 = vst.msk [vmem:[%s314 + $0xf9] sm:$0xff] %vm236, %v303
        %337 = vst.msk [vmem:[%s314 + $0x109] sm:$0xff] %vm236, %v304
        %338 = vst.msk [vmem:[%s314 + $0x111] sm:$0xff] %vm236, %v305
        %339 = vst.msk [vmem:[%s314 + $0x121] sm:$0xff] %vm236, %v306
        %340 = vst.msk [vmem:[%s314 + $0x129] sm:$0xff] %vm236, %v307
        %341 = vst.msk [vmem:[%s314 + $0x139] sm:$0xff] %vm236, %v308
        %342 = vst.msk [vmem:[%s314 + $0x141] sm:$0xff] %vm236, %v309
        %343 = vst.msk [vmem:[%s314 + $0x151] sm:$0xff] %vm236, %v310
        %344 = vst.msk [vmem:[%s314 + $0x159] sm:$0xff] %vm236, %v311
        %345 = vst.msk [vmem:[%s314 + $0x169] sm:$0xff] %vm236, %v312
        %346 = vst.msk [vmem:[%s314 + $0x171] sm:$0xff] %vm236, %v313
        %v347 = vld [vmem:[#allocation2] sm:$0xff]
        %v348 = vld [vmem:[#allocation2 + $0x8] sm:$0xff]
        %v349 = vld [vmem:[#allocation2 + $0x18] sm:$0xff]
        %v350 = vld [vmem:[#allocation2 + $0x20] sm:$0xff]
        %v351 = vld [vmem:[#allocation2 + $0x30] sm:$0xff]
        %v352 = vld [vmem:[#allocation2 + $0x38] sm:$0xff]
        %v353 = vld [vmem:[#allocation2 + $0x48] sm:$0xff]
        %v354 = vld [vmem:[#allocation2 + $0x50] sm:$0xff]
        %v355 = vld [vmem:[#allocation2 + $0x60] sm:$0xff]
        %v356 = vld [vmem:[#allocation2 + $0x68] sm:$0xff]
        %v357 = vld [vmem:[#allocation2 + $0x78] sm:$0xff]
        %v358 = vld [vmem:[#allocation2 + $0x80] sm:$0xff]
        %v359 = vld [vmem:[#allocation2 + $0x90] sm:$0xff]
        %v360 = vld [vmem:[#allocation2 + $0x98] sm:$0xff]
        %v361 = vld [vmem:[#allocation2 + $0xa8] sm:$0xff]
        %v362 = vld [vmem:[#allocation2 + $0xb0] sm:$0xff]
        %v363 = vld [vmem:[#allocation2 + $0xc0] sm:$0xff]
        %v364 = vld [vmem:[#allocation2 + $0xc8] sm:$0xff]
        %v365 = vld [vmem:[#allocation2 + $0xd8] sm:$0xff]
        %v366 = vld [vmem:[#allocation2 + $0xe0] sm:$0xff]
        %v367 = vld [vmem:[#allocation2 + $0xf0] sm:$0xff]
        %v368 = vld [vmem:[#allocation2 + $0xf8] sm:$0xff]
        %v369 = vld [vmem:[#allocation2 + $0x108] sm:$0xff]
        %v370 = vld [vmem:[#allocation2 + $0x110] sm:$0xff]
        %v371 = vld [vmem:[#allocation2 + $0x120] sm:$0xff]
        %v372 = vld [vmem:[#allocation2 + $0x128] sm:$0xff]
        %v373 = vld [vmem:[#allocation2 + $0x138] sm:$0xff]
        %v374 = vld [vmem:[#allocation2 + $0x140] sm:$0xff]
        %v375 = vld [vmem:[#allocation2 + $0x150] sm:$0xff]
        %v376 = vld [vmem:[#allocation2 + $0x158] sm:$0xff]
        %v377 = vld [vmem:[#allocation2 + $0x168] sm:$0xff]
        %v378 = vld [vmem:[#allocation2 + $0x170] sm:$0xff]
        %379 = vst.msk [vmem:[#allocation3] sm:$0xff] %vm236, %v347
        %380 = vst.msk [vmem:[#allocation3 + $0x8] sm:$0xff] %vm236, %v348
        %381 = vst.msk [vmem:[#allocation3 + $0x10] sm:$0xff] %vm236, %v349
        %382 = vst.msk [vmem:[#allocation3 + $0x18] sm:$0xff] %vm236, %v350
        %383 = vst.msk [vmem:[#allocation3 + $0x20] sm:$0xff] %vm236, %v351
        %384 = vst.msk [vmem:[#allocation3 + $0x28] sm:$0xff] %vm236, %v352
        %385 = vst.msk [vmem:[#allocation3 + $0x30] sm:$0xff] %vm236, %v353
        %386 = vst.msk [vmem:[#allocation3 + $0x38] sm:$0xff] %vm236, %v354
        %387 = vst.msk [vmem:[#allocation3 + $0x40] sm:$0xff] %vm236, %v355
        %388 = vst.msk [vmem:[#allocation3 + $0x48] sm:$0xff] %vm236, %v356
        %389 = vst.msk [vmem:[#allocation3 + $0x50] sm:$0xff] %vm236, %v357
        %390 = vst.msk [vmem:[#allocation3 + $0x58] sm:$0xff] %vm236, %v358
        %391 = vst.msk [vmem:[#allocation3 + $0x60] sm:$0xff] %vm236, %v359
        %392 = vst.msk [vmem:[#allocation3 + $0x68] sm:$0xff] %vm236, %v360
        %393 = vst.msk [vmem:[#allocation3 + $0x70] sm:$0xff] %vm236, %v361
        %394 = vst.msk [vmem:[#allocation3 + $0x78] sm:$0xff] %vm236, %v362
        %395 = vst.msk [vmem:[#allocation3 + $0x80] sm:$0xff] %vm236, %v363
        %396 = vst.msk [vmem:[#allocation3 + $0x88] sm:$0xff] %vm236, %v364
        %397 = vst.msk [vmem:[#allocation3 + $0x90] sm:$0xff] %vm236, %v365
        %398 = vst.msk [vmem:[#allocation3 + $0x98] sm:$0xff] %vm236, %v366
        %399 = vst.msk [vmem:[#allocation3 + $0xa0] sm:$0xff] %vm236, %v367
        %400 = vst.msk [vmem:[#allocation3 + $0xa8] sm:$0xff] %vm236, %v368
        %401 = vst.msk [vmem:[#allocation3 + $0xb0] sm:$0xff] %vm236, %v369
        %402 = vst.msk [vmem:[#allocation3 + $0xb8] sm:$0xff] %vm236, %v370
        %403 = vst.msk [vmem:[#allocation3 + $0xc0] sm:$0xff] %vm236, %v371
        %404 = vst.msk [vmem:[#allocation3 + $0xc8] sm:$0xff] %vm236, %v372
        %405 = vst.msk [vmem:[#allocation3 + $0xd0] sm:$0xff] %vm236, %v373
        %406 = vst.msk [vmem:[#allocation3 + $0xd8] sm:$0xff] %vm236, %v374
        %407 = vst.msk [vmem:[#allocation3 + $0xe0] sm:$0xff] %vm236, %v375
        %408 = vst.msk [vmem:[#allocation3 + $0xe8] sm:$0xff] %vm236, %v376
        %409 = vst.msk [vmem:[#allocation3 + $0xf0] sm:$0xff] %vm236, %v377
        %410 = vst.msk [vmem:[#allocation3 + $0xf8] sm:$0xff] %vm236, %v378
        %v411 = vld [vmem:[#allocation2 + $0x1] sm:$0xff]
        %v412 = vld [vmem:[#allocation2 + $0x9] sm:$0xff]
        %v413 = vld [vmem:[#allocation2 + $0x19] sm:$0xff]
        %v414 = vld [vmem:[#allocation2 + $0x21] sm:$0xff]
        %v415 = vld [vmem:[#allocation2 + $0x31] sm:$0xff]
        %v416 = vld [vmem:[#allocation2 + $0x39] sm:$0xff]
        %v417 = vld [vmem:[#allocation2 + $0x49] sm:$0xff]
        %v418 = vld [vmem:[#allocation2 + $0x51] sm:$0xff]
        %v419 = vld [vmem:[#allocation2 + $0x61] sm:$0xff]
        %v420 = vld [vmem:[#allocation2 + $0x69] sm:$0xff]
        %v421 = vld [vmem:[#allocation2 + $0x79] sm:$0xff]
        %v422 = vld [vmem:[#allocation2 + $0x81] sm:$0xff]
        %v423 = vld [vmem:[#allocation2 + $0x91] sm:$0xff]
        %v424 = vld [vmem:[#allocation2 + $0x99] sm:$0xff]
        %v425 = vld [vmem:[#allocation2 + $0xa9] sm:$0xff]
        %v426 = vld [vmem:[#allocation2 + $0xb1] sm:$0xff]
        %v427 = vld [vmem:[#allocation2 + $0xc1] sm:$0xff]
        %v428 = vld [vmem:[#allocation2 + $0xc9] sm:$0xff]
        %v429 = vld [vmem:[#allocation2 + $0xd9] sm:$0xff]
        %v430 = vld [vmem:[#allocation2 + $0xe1] sm:$0xff]
        %v431 = vld [vmem:[#allocation2 + $0xf1] sm:$0xff]
        %v432 = vld [vmem:[#allocation2 + $0xf9] sm:$0xff]
        %v433 = vld [vmem:[#allocation2 + $0x109] sm:$0xff]
        %v434 = vld [vmem:[#allocation2 + $0x111] sm:$0xff]
        %v435 = vld [vmem:[#allocation2 + $0x121] sm:$0xff]
        %v436 = vld [vmem:[#allocation2 + $0x129] sm:$0xff]
        %v437 = vld [vmem:[#allocation2 + $0x139] sm:$0xff]
        %v438 = vld [vmem:[#allocation2 + $0x141] sm:$0xff]
        %v439 = vld [vmem:[#allocation2 + $0x151] sm:$0xff]
        %v440 = vld [vmem:[#allocation2 + $0x159] sm:$0xff]
        %v441 = vld [vmem:[#allocation2 + $0x169] sm:$0xff]
        %v442 = vld [vmem:[#allocation2 + $0x171] sm:$0xff]
        %475 = vrot.lane.b32.xlu0 %v411, 4
        %v476 = vpop.permute.xlu0 %475
        %477 = vrot.lane.b32.xlu0 %v412, 4
        %v478 = vpop.permute.xlu0 %477
        %479 = vrot.lane.b32.xlu0 %v413, 4
        %v480 = vpop.permute.xlu0 %479
        %481 = vrot.lane.b32.xlu0 %v414, 4
        %v482 = vpop.permute.xlu0 %481
        %483 = vrot.lane.b32.xlu0 %v415, 4
        %v484 = vpop.permute.xlu0 %483
        %485 = vrot.lane.b32.xlu0 %v416, 4
        %v486 = vpop.permute.xlu0 %485
        %487 = vrot.lane.b32.xlu0 %v417, 4
        %v488 = vpop.permute.xlu0 %487
        %489 = vrot.lane.b32.xlu0 %v418, 4
        %v490 = vpop.permute.xlu0 %489
        %491 = vrot.lane.b32.xlu0 %v419, 4
        %v492 = vpop.permute.xlu0 %491
        %493 = vrot.lane.b32.xlu0 %v420, 4
        %v494 = vpop.permute.xlu0 %493
        %495 = vrot.lane.b32.xlu0 %v421, 4
        %v496 = vpop.permute.xlu0 %495
        %497 = vrot.lane.b32.xlu0 %v422, 4
        %v498 = vpop.permute.xlu0 %497
        %499 = vrot.lane.b32.xlu0 %v423, 4
        %v500 = vpop.permute.xlu0 %499
        %501 = vrot.lane.b32.xlu0 %v424, 4
        %v502 = vpop.permute.xlu0 %501
        %503 = vrot.lane.b32.xlu0 %v425, 4
        %v504 = vpop.permute.xlu0 %503
        %505 = vrot.lane.b32.xlu0 %v426, 4
        %v506 = vpop.permute.xlu0 %505
        %507 = vrot.lane.b32.xlu0 %v427, 4
        %v508 = vpop.permute.xlu0 %507
        %509 = vrot.lane.b32.xlu0 %v428, 4
        %v510 = vpop.permute.xlu0 %509
        %511 = vrot.lane.b32.xlu0 %v429, 4
        %v512 = vpop.permute.xlu0 %511
        %513 = vrot.lane.b32.xlu0 %v430, 4
        %v514 = vpop.permute.xlu0 %513
        %515 = vrot.lane.b32.xlu0 %v431, 4
        %v516 = vpop.permute.xlu0 %515
        %517 = vrot.lane.b32.xlu0 %v432, 4
        %v518 = vpop.permute.xlu0 %517
        %519 = vrot.lane.b32.xlu0 %v433, 4
        %v520 = vpop.permute.xlu0 %519
        %521 = vrot.lane.b32.xlu0 %v434, 4
        %v522 = vpop.permute.xlu0 %521
        %523 = vrot.lane.b32.xlu0 %v435, 4
        %v524 = vpop.permute.xlu0 %523
        %525 = vrot.lane.b32.xlu0 %v436, 4
        %v526 = vpop.permute.xlu0 %525
        %527 = vrot.lane.b32.xlu0 %v437, 4
        %v528 = vpop.permute.xlu0 %527
        %529 = vrot.lane.b32.xlu0 %v438, 4
        %v530 = vpop.permute.xlu0 %529
        %531 = vrot.lane.b32.xlu0 %v439, 4
        %v532 = vpop.permute.xlu0 %531
        %533 = vrot.lane.b32.xlu0 %v440, 4
        %v534 = vpop.permute.xlu0 %533
        %535 = vrot.lane.b32.xlu0 %v441, 4
        %v536 = vpop.permute.xlu0 %535
        %537 = vrot.lane.b32.xlu0 %v442, 4
        %v538 = vpop.permute.xlu0 %537
        %vm571 = vcmask 64544
        %572 = vst.msk [vmem:[#allocation3] sm:$0xff] %vm571, %v476
        %573 = vst.msk [vmem:[#allocation3 + $0x8] sm:$0xff] %vm571, %v478
        %574 = vst.msk [vmem:[#allocation3 + $0x10] sm:$0xff] %vm571, %v480
        %575 = vst.msk [vmem:[#allocation3 + $0x18] sm:$0xff] %vm571, %v482
        %576 = vst.msk [vmem:[#allocation3 + $0x20] sm:$0xff] %vm571, %v484
        %577 = vst.msk [vmem:[#allocation3 + $0x28] sm:$0xff] %vm571, %v486
        %578 = vst.msk [vmem:[#allocation3 + $0x30] sm:$0xff] %vm571, %v488
        %579 = vst.msk [vmem:[#allocation3 + $0x38] sm:$0xff] %vm571, %v490
        %580 = vst.msk [vmem:[#allocation3 + $0x40] sm:$0xff] %vm571, %v492
        %581 = vst.msk [vmem:[#allocation3 + $0x48] sm:$0xff] %vm571, %v494
        %582 = vst.msk [vmem:[#allocation3 + $0x50] sm:$0xff] %vm571, %v496
        %583 = vst.msk [vmem:[#allocation3 + $0x58] sm:$0xff] %vm571, %v498
        %584 = vst.msk [vmem:[#allocation3 + $0x60] sm:$0xff] %vm571, %v500
        %585 = vst.msk [vmem:[#allocation3 + $0x68] sm:$0xff] %vm571, %v502
        %586 = vst.msk [vmem:[#allocation3 + $0x70] sm:$0xff] %vm571, %v504
        %587 = vst.msk [vmem:[#allocation3 + $0x78] sm:$0xff] %vm571, %v506
        %588 = vst.msk [vmem:[#allocation3 + $0x80] sm:$0xff] %vm571, %v508
        %589 = vst.msk [vmem:[#allocation3 + $0x88] sm:$0xff] %vm571, %v510
        %590 = vst.msk [vmem:[#allocation3 + $0x90] sm:$0xff] %vm571, %v512
        %591 = vst.msk [vmem:[#allocation3 + $0x98] sm:$0xff] %vm571, %v514
        %592 = vst.msk [vmem:[#allocation3 + $0xa0] sm:$0xff] %vm571, %v516
        %593 = vst.msk [vmem:[#allocation3 + $0xa8] sm:$0xff] %vm571, %v518
        %594 = vst.msk [vmem:[#allocation3 + $0xb0] sm:$0xff] %vm571, %v520
        %595 = vst.msk [vmem:[#allocation3 + $0xb8] sm:$0xff] %vm571, %v522
        %596 = vst.msk [vmem:[#allocation3 + $0xc0] sm:$0xff] %vm571, %v524
        %597 = vst.msk [vmem:[#allocation3 + $0xc8] sm:$0xff] %vm571, %v526
        %598 = vst.msk [vmem:[#allocation3 + $0xd0] sm:$0xff] %vm571, %v528
        %599 = vst.msk [vmem:[#allocation3 + $0xd8] sm:$0xff] %vm571, %v530
        %600 = vst.msk [vmem:[#allocation3 + $0xe0] sm:$0xff] %vm571, %v532
        %601 = vst.msk [vmem:[#allocation3 + $0xe8] sm:$0xff] %vm571, %v534
        %602 = vst.msk [vmem:[#allocation3 + $0xf0] sm:$0xff] %vm571, %v536
        %603 = vst.msk [vmem:[#allocation3 + $0xf8] sm:$0xff] %vm571, %v538
        %v604 = vld [vmem:[#allocation2 + $0x2] sm:$0xff]
        %v605 = vld [vmem:[#allocation2 + $0xa] sm:$0xff]
        %v606 = vld [vmem:[#allocation2 + $0x1a] sm:$0xff]
        %v607 = vld [vmem:[#allocation2 + $0x22] sm:$0xff]
        %v608 = vld [vmem:[#allocation2 + $0x32] sm:$0xff]
        %v609 = vld [vmem:[#allocation2 + $0x3a] sm:$0xff]
        %v610 = vld [vmem:[#allocation2 + $0x4a] sm:$0xff]
        %v611 = vld [vmem:[#allocation2 + $0x52] sm:$0xff]
        %v612 = vld [vmem:[#allocation2 + $0x62] sm:$0xff]
        %v613 = vld [vmem:[#allocation2 + $0x6a] sm:$0xff]
        %v614 = vld [vmem:[#allocation2 + $0x7a] sm:$0xff]
        %v615 = vld [vmem:[#allocation2 + $0x82] sm:$0xff]
        %v616 = vld [vmem:[#allocation2 + $0x92] sm:$0xff]
        %v617 = vld [vmem:[#allocation2 + $0x9a] sm:$0xff]
        %v618 = vld [vmem:[#allocation2 + $0xaa] sm:$0xff]
        %v619 = vld [vmem:[#allocation2 + $0xb2] sm:$0xff]
        %v620 = vld [vmem:[#allocation2 + $0xc2] sm:$0xff]
        %v621 = vld [vmem:[#allocation2 + $0xca] sm:$0xff]
        %v622 = vld [vmem:[#allocation2 + $0xda] sm:$0xff]
        %v623 = vld [vmem:[#allocation2 + $0xe2] sm:$0xff]
        %v624 = vld [vmem:[#allocation2 + $0xf2] sm:$0xff]
        %v625 = vld [vmem:[#allocation2 + $0xfa] sm:$0xff]
        %v626 = vld [vmem:[#allocation2 + $0x10a] sm:$0xff]
        %v627 = vld [vmem:[#allocation2 + $0x112] sm:$0xff]
        %v628 = vld [vmem:[#allocation2 + $0x122] sm:$0xff]
        %v629 = vld [vmem:[#allocation2 + $0x12a] sm:$0xff]
        %v630 = vld [vmem:[#allocation2 + $0x13a] sm:$0xff]
        %v631 = vld [vmem:[#allocation2 + $0x142] sm:$0xff]
        %v632 = vld [vmem:[#allocation2 + $0x152] sm:$0xff]
        %v633 = vld [vmem:[#allocation2 + $0x15a] sm:$0xff]
        %v634 = vld [vmem:[#allocation2 + $0x16a] sm:$0xff]
        %v635 = vld [vmem:[#allocation2 + $0x172] sm:$0xff]
        %668 = vrot.lane.b32.xlu0 %v604, 8
        %v669 = vpop.permute.xlu0 %668
        %670 = vrot.lane.b32.xlu0 %v605, 8
        %v671 = vpop.permute.xlu0 %670
        %672 = vrot.lane.b32.xlu0 %v606, 8
        %v673 = vpop.permute.xlu0 %672
        %674 = vrot.lane.b32.xlu0 %v607, 8
        %v675 = vpop.permute.xlu0 %674
        %676 = vrot.lane.b32.xlu0 %v608, 8
        %v677 = vpop.permute.xlu0 %676
        %678 = vrot.lane.b32.xlu0 %v609, 8
        %v679 = vpop.permute.xlu0 %678
        %680 = vrot.lane.b32.xlu0 %v610, 8
        %v681 = vpop.permute.xlu0 %680
        %682 = vrot.lane.b32.xlu0 %v611, 8
        %v683 = vpop.permute.xlu0 %682
        %684 = vrot.lane.b32.xlu0 %v612, 8
        %v685 = vpop.permute.xlu0 %684
        %686 = vrot.lane.b32.xlu0 %v613, 8
        %v687 = vpop.permute.xlu0 %686
        %688 = vrot.lane.b32.xlu0 %v614, 8
        %v689 = vpop.permute.xlu0 %688
        %690 = vrot.lane.b32.xlu0 %v615, 8
        %v691 = vpop.permute.xlu0 %690
        %692 = vrot.lane.b32.xlu0 %v616, 8
        %v693 = vpop.permute.xlu0 %692
        %694 = vrot.lane.b32.xlu0 %v617, 8
        %v695 = vpop.permute.xlu0 %694
        %696 = vrot.lane.b32.xlu0 %v618, 8
        %v697 = vpop.permute.xlu0 %696
        %698 = vrot.lane.b32.xlu0 %v619, 8
        %v699 = vpop.permute.xlu0 %698
        %700 = vrot.lane.b32.xlu0 %v620, 8
        %v701 = vpop.permute.xlu0 %700
        %702 = vrot.lane.b32.xlu0 %v621, 8
        %v703 = vpop.permute.xlu0 %702
        %704 = vrot.lane.b32.xlu0 %v622, 8
        %v705 = vpop.permute.xlu0 %704
        %706 = vrot.lane.b32.xlu0 %v623, 8
        %v707 = vpop.permute.xlu0 %706
        %708 = vrot.lane.b32.xlu0 %v624, 8
        %v709 = vpop.permute.xlu0 %708
        %710 = vrot.lane.b32.xlu0 %v625, 8
        %v711 = vpop.permute.xlu0 %710
        %712 = vrot.lane.b32.xlu0 %v626, 8
        %v713 = vpop.permute.xlu0 %712
        %714 = vrot.lane.b32.xlu0 %v627, 8
        %v715 = vpop.permute.xlu0 %714
        %716 = vrot.lane.b32.xlu0 %v628, 8
        %v717 = vpop.permute.xlu0 %716
        %718 = vrot.lane.b32.xlu0 %v629, 8
        %v719 = vpop.permute.xlu0 %718
        %720 = vrot.lane.b32.xlu0 %v630, 8
        %v721 = vpop.permute.xlu0 %720
        %722 = vrot.lane.b32.xlu0 %v631, 8
        %v723 = vpop.permute.xlu0 %722
        %724 = vrot.lane.b32.xlu0 %v632, 8
        %v725 = vpop.permute.xlu0 %724
        %726 = vrot.lane.b32.xlu0 %v633, 8
        %v727 = vpop.permute.xlu0 %726
        %728 = vrot.lane.b32.xlu0 %v634, 8
        %v729 = vpop.permute.xlu0 %728
        %730 = vrot.lane.b32.xlu0 %v635, 8
        %v731 = vpop.permute.xlu0 %730
        %vm764 = vcmask 97344
        %765 = vst.msk [vmem:[#allocation3] sm:$0xff] %vm764, %v669
        %766 = vst.msk [vmem:[#allocation3 + $0x8] sm:$0xff] %vm764, %v671
        %767 = vst.msk [vmem:[#allocation3 + $0x10] sm:$0xff] %vm764, %v673
        %768 = vst.msk [vmem:[#allocation3 + $0x18] sm:$0xff] %vm764, %v675
        %769 = vst.msk [vmem:[#allocation3 + $0x20] sm:$0xff] %vm764, %v677
        %770 = vst.msk [vmem:[#allocation3 + $0x28] sm:$0xff] %vm764, %v679
        %771 = vst.msk [vmem:[#allocation3 + $0x30] sm:$0xff] %vm764, %v681
        %772 = vst.msk [vmem:[#allocation3 + $0x38] sm:$0xff] %vm764, %v683
        %773 = vst.msk [vmem:[#allocation3 + $0x40] sm:$0xff] %vm764, %v685
        %774 = vst.msk [vmem:[#allocation3 + $0x48] sm:$0xff] %vm764, %v687
        %775 = vst.msk [vmem:[#allocation3 + $0x50] sm:$0xff] %vm764, %v689
        %776 = vst.msk [vmem:[#allocation3 + $0x58] sm:$0xff] %vm764, %v691
        %777 = vst.msk [vmem:[#allocation3 + $0x60] sm:$0xff] %vm764, %v693
        %778 = vst.msk [vmem:[#allocation3 + $0x68] sm:$0xff] %vm764, %v695
        %779 = vst.msk [vmem:[#allocation3 + $0x70] sm:$0xff] %vm764, %v697
        %780 = vst.msk [vmem:[#allocation3 + $0x78] sm:$0xff] %vm764, %v699
        %781 = vst.msk [vmem:[#allocation3 + $0x80] sm:$0xff] %vm764, %v701
        %782 = vst.msk [vmem:[#allocation3 + $0x88] sm:$0xff] %vm764, %v703
        %783 = vst.msk [vmem:[#allocation3 + $0x90] sm:$0xff] %vm764, %v705
        %784 = vst.msk [vmem:[#allocation3 + $0x98] sm:$0xff] %vm764, %v707
        %785 = vst.msk [vmem:[#allocation3 + $0xa0] sm:$0xff] %vm764, %v709
        %786 = vst.msk [vmem:[#allocation3 + $0xa8] sm:$0xff] %vm764, %v711
        %787 = vst.msk [vmem:[#allocation3 + $0xb0] sm:$0xff] %vm764, %v713
        %788 = vst.msk [vmem:[#allocation3 + $0xb8] sm:$0xff] %vm764, %v715
        %789 = vst.msk [vmem:[#allocation3 + $0xc0] sm:$0xff] %vm764, %v717
        %790 = vst.msk [vmem:[#allocation3 + $0xc8] sm:$0xff] %vm764, %v719
        %791 = vst.msk [vmem:[#allocation3 + $0xd0] sm:$0xff] %vm764, %v721
        %792 = vst.msk [vmem:[#allocation3 + $0xd8] sm:$0xff] %vm764, %v723
        %793 = vst.msk [vmem:[#allocation3 + $0xe0] sm:$0xff] %vm764, %v725
        %794 = vst.msk [vmem:[#allocation3 + $0xe8] sm:$0xff] %vm764, %v727
        %795 = vst.msk [vmem:[#allocation3 + $0xf0] sm:$0xff] %vm764, %v729
        %796 = vst.msk [vmem:[#allocation3 + $0xf8] sm:$0xff] %vm764, %v731
        %v797 = vld [vmem:[#allocation3] sm:$0xff]
        %v798 = vld [vmem:[#allocation3 + $0x8] sm:$0xff]
        %v799 = vld [vmem:[#allocation3 + $0x10] sm:$0xff]
        %v800 = vld [vmem:[#allocation3 + $0x18] sm:$0xff]
        %v801 = vld [vmem:[#allocation3 + $0x20] sm:$0xff]
        %v802 = vld [vmem:[#allocation3 + $0x28] sm:$0xff]
        %v803 = vld [vmem:[#allocation3 + $0x30] sm:$0xff]
        %v804 = vld [vmem:[#allocation3 + $0x38] sm:$0xff]
        %v805 = vld [vmem:[#allocation3 + $0x40] sm:$0xff]
        %v806 = vld [vmem:[#allocation3 + $0x48] sm:$0xff]
        %v807 = vld [vmem:[#allocation3 + $0x50] sm:$0xff]
        %v808 = vld [vmem:[#allocation3 + $0x58] sm:$0xff]
        %v809 = vld [vmem:[#allocation3 + $0x60] sm:$0xff]
        %v810 = vld [vmem:[#allocation3 + $0x68] sm:$0xff]
        %v811 = vld [vmem:[#allocation3 + $0x70] sm:$0xff]
        %v812 = vld [vmem:[#allocation3 + $0x78] sm:$0xff]
        %v813 = vld [vmem:[#allocation3 + $0x80] sm:$0xff]
        %v814 = vld [vmem:[#allocation3 + $0x88] sm:$0xff]
        %v815 = vld [vmem:[#allocation3 + $0x90] sm:$0xff]
        %v816 = vld [vmem:[#allocation3 + $0x98] sm:$0xff]
        %v817 = vld [vmem:[#allocation3 + $0xa0] sm:$0xff]
        %v818 = vld [vmem:[#allocation3 + $0xa8] sm:$0xff]
        %v819 = vld [vmem:[#allocation3 + $0xb0] sm:$0xff]
        %v820 = vld [vmem:[#allocation3 + $0xb8] sm:$0xff]
        %v821 = vld [vmem:[#allocation3 + $0xc0] sm:$0xff]
        %v822 = vld [vmem:[#allocation3 + $0xc8] sm:$0xff]
        %v823 = vld [vmem:[#allocation3 + $0xd0] sm:$0xff]
        %v824 = vld [vmem:[#allocation3 + $0xd8] sm:$0xff]
        %v825 = vld [vmem:[#allocation3 + $0xe0] sm:$0xff]
        %v826 = vld [vmem:[#allocation3 + $0xe8] sm:$0xff]
        %v827 = vld [vmem:[#allocation3 + $0xf0] sm:$0xff]
        %v828 = vld [vmem:[#allocation3 + $0xf8] sm:$0xff]
        %v829 = vld [vmem:[%s1] sm:$0xff]
        %v830 = vld [vmem:[%s1 + $0x8] sm:$0xf]
        %v831 = vld [vmem:[%s314] sm:$0xff]
        %v832 = vld [vmem:[%s314 + $0x8] sm:$0xff]
        %v833 = vld [vmem:[%s314 + $0x18] sm:$0xff]
        %v834 = vld [vmem:[%s314 + $0x20] sm:$0xff]
        %v835 = vld [vmem:[%s314 + $0x30] sm:$0xff]
        %v836 = vld [vmem:[%s314 + $0x38] sm:$0xff]
        %v837 = vld [vmem:[%s314 + $0x48] sm:$0xff]
        %v838 = vld [vmem:[%s314 + $0x50] sm:$0xff]
        %v839 = vld [vmem:[%s314 + $0x60] sm:$0xff]
        %v840 = vld [vmem:[%s314 + $0x68] sm:$0xff]
        %v841 = vld [vmem:[%s314 + $0x78] sm:$0xff]
        %v842 = vld [vmem:[%s314 + $0x80] sm:$0xff]
        %v843 = vld [vmem:[%s314 + $0x90] sm:$0xff]
        %v844 = vld [vmem:[%s314 + $0x98] sm:$0xff]
        %v845 = vld [vmem:[%s314 + $0xa8] sm:$0xff]
        %v846 = vld [vmem:[%s314 + $0xb0] sm:$0xff]
        %v847 = vld [vmem:[%s314 + $0xc0] sm:$0xff]
        %v848 = vld [vmem:[%s314 + $0xc8] sm:$0xff]
        %v849 = vld [vmem:[%s314 + $0xd8] sm:$0xff]
        %v850 = vld [vmem:[%s314 + $0xe0] sm:$0xff]
        %v851 = vld [vmem:[%s314 + $0xf0] sm:$0xff]
        %v852 = vld [vmem:[%s314 + $0xf8] sm:$0xff]
        %v853 = vld [vmem:[%s314 + $0x108] sm:$0xff]
        %v854 = vld [vmem:[%s314 + $0x110] sm:$0xff]
        %v855 = vld [vmem:[%s314 + $0x120] sm:$0xff]
        %v856 = vld [vmem:[%s314 + $0x128] sm:$0xff]
        %v857 = vld [vmem:[%s314 + $0x138] sm:$0xff]
        %v858 = vld [vmem:[%s314 + $0x140] sm:$0xff]
        %v859 = vld [vmem:[%s314 + $0x150] sm:$0xff]
        %v860 = vld [vmem:[%s314 + $0x158] sm:$0xff]
        %v861 = vld [vmem:[%s314 + $0x168] sm:$0xff]
        %v862 = vld [vmem:[%s314 + $0x170] sm:$0xff]
        %863 = vst.msk [vmem:[#allocation4] sm:$0xff] %vm236, %v831
        %864 = vst.msk [vmem:[#allocation4 + $0x8] sm:$0xff] %vm236, %v832
        %865 = vst.msk [vmem:[#allocation4 + $0x10] sm:$0xff] %vm236, %v833
        %866 = vst.msk [vmem:[#allocation4 + $0x18] sm:$0xff] %vm236, %v834
        %867 = vst.msk [vmem:[#allocation4 + $0x20] sm:$0xff] %vm236, %v835
        %868 = vst.msk [vmem:[#allocation4 + $0x28] sm:$0xff] %vm236, %v836
        %869 = vst.msk [vmem:[#allocation4 + $0x30] sm:$0xff] %vm236, %v837
        %870 = vst.msk [vmem:[#allocation4 + $0x38] sm:$0xff] %vm236, %v838
        %871 = vst.msk [vmem:[#allocation4 + $0x40] sm:$0xff] %vm236, %v839
        %872 = vst.msk [vmem:[#allocation4 + $0x48] sm:$0xff] %vm236, %v840
        %873 = vst.msk [vmem:[#allocation4 + $0x50] sm:$0xff] %vm236, %v841
        %874 = vst.msk [vmem:[#allocation4 + $0x58] sm:$0xff] %vm236, %v842
        %875 = vst.msk [vmem:[#allocation4 + $0x60] sm:$0xff] %vm236, %v843
        %876 = vst.msk [vmem:[#allocation4 + $0x68] sm:$0xff] %vm236, %v844
        %877 = vst.msk [vmem:[#allocation4 + $0x70] sm:$0xff] %vm236, %v845
        %878 = vst.msk [vmem:[#allocation4 + $0x78] sm:$0xff] %vm236, %v846
        %879 = vst.msk [vmem:[#allocation4 + $0x80] sm:$0xff] %vm236, %v847
        %880 = vst.msk [vmem:[#allocation4 + $0x88] sm:$0xff] %vm236, %v848
        %881 = vst.msk [vmem:[#allocation4 + $0x90] sm:$0xff] %vm236, %v849
        %882 = vst.msk [vmem:[#allocation4 + $0x98] sm:$0xff] %vm236, %v850
        %883 = vst.msk [vmem:[#allocation4 + $0xa0] sm:$0xff] %vm236, %v851
        %884 = vst.msk [vmem:[#allocation4 + $0xa8] sm:$0xff] %vm236, %v852
        %885 = vst.msk [vmem:[#allocation4 + $0xb0] sm:$0xff] %vm236, %v853
        %886 = vst.msk [vmem:[#allocation4 + $0xb8] sm:$0xff] %vm236, %v854
        %887 = vst.msk [vmem:[#allocation4 + $0xc0] sm:$0xff] %vm236, %v855
        %888 = vst.msk [vmem:[#allocation4 + $0xc8] sm:$0xff] %vm236, %v856
        %889 = vst.msk [vmem:[#allocation4 + $0xd0] sm:$0xff] %vm236, %v857
        %890 = vst.msk [vmem:[#allocation4 + $0xd8] sm:$0xff] %vm236, %v858
        %891 = vst.msk [vmem:[#allocation4 + $0xe0] sm:$0xff] %vm236, %v859
        %892 = vst.msk [vmem:[#allocation4 + $0xe8] sm:$0xff] %vm236, %v860
        %893 = vst.msk [vmem:[#allocation4 + $0xf0] sm:$0xff] %vm236, %v861
        %894 = vst.msk [vmem:[#allocation4 + $0xf8] sm:$0xff] %vm236, %v862
        %v895 = vld [vmem:[%s314 + $0x1] sm:$0xff]
        %v896 = vld [vmem:[%s314 + $0x9] sm:$0xff]
        %v897 = vld [vmem:[%s314 + $0x19] sm:$0xff]
        %v898 = vld [vmem:[%s314 + $0x21] sm:$0xff]
        %v899 = vld [vmem:[%s314 + $0x31] sm:$0xff]
        %v900 = vld [vmem:[%s314 + $0x39] sm:$0xff]
        %v901 = vld [vmem:[%s314 + $0x49] sm:$0xff]
        %v902 = vld [vmem:[%s314 + $0x51] sm:$0xff]
        %v903 = vld [vmem:[%s314 + $0x61] sm:$0xff]
        %v904 = vld [vmem:[%s314 + $0x69] sm:$0xff]
        %v905 = vld [vmem:[%s314 + $0x79] sm:$0xff]
        %v906 = vld [vmem:[%s314 + $0x81] sm:$0xff]
        %v907 = vld [vmem:[%s314 + $0x91] sm:$0xff]
        %v908 = vld [vmem:[%s314 + $0x99] sm:$0xff]
        %v909 = vld [vmem:[%s314 + $0xa9] sm:$0xff]
        %v910 = vld [vmem:[%s314 + $0xb1] sm:$0xff]
        %v911 = vld [vmem:[%s314 + $0xc1] sm:$0xff]
        %v912 = vld [vmem:[%s314 + $0xc9] sm:$0xff]
        %v913 = vld [vmem:[%s314 + $0xd9] sm:$0xff]
        %v914 = vld [vmem:[%s314 + $0xe1] sm:$0xff]
        %v915 = vld [vmem:[%s314 + $0xf1] sm:$0xff]
        %v916 = vld [vmem:[%s314 + $0xf9] sm:$0xff]
        %v917 = vld [vmem:[%s314 + $0x109] sm:$0xff]
        %v918 = vld [vmem:[%s314 + $0x111] sm:$0xff]
        %v919 = vld [vmem:[%s314 + $0x121] sm:$0xff]
        %v920 = vld [vmem:[%s314 + $0x129] sm:$0xff]
        %v921 = vld [vmem:[%s314 + $0x139] sm:$0xff]
        %v922 = vld [vmem:[%s314 + $0x141] sm:$0xff]
        %v923 = vld [vmem:[%s314 + $0x151] sm:$0xff]
        %v924 = vld [vmem:[%s314 + $0x159] sm:$0xff]
        %v925 = vld [vmem:[%s314 + $0x169] sm:$0xff]
        %v926 = vld [vmem:[%s314 + $0x171] sm:$0xff]
        %959 = vrot.lane.b32.xlu0 %v895, 4
        %v960 = vpop.permute.xlu0 %959
        %961 = vrot.lane.b32.xlu0 %v896, 4
        %v962 = vpop.permute.xlu0 %961
        %963 = vrot.lane.b32.xlu0 %v897, 4
        %v964 = vpop.permute.xlu0 %963
        %965 = vrot.lane.b32.xlu0 %v898, 4
        %v966 = vpop.permute.xlu0 %965
        %967 = vrot.lane.b32.xlu0 %v899, 4
        %v968 = vpop.permute.xlu0 %967
        %969 = vrot.lane.b32.xlu0 %v900, 4
        %v970 = vpop.permute.xlu0 %969
        %971 = vrot.lane.b32.xlu0 %v901, 4
        %v972 = vpop.permute.xlu0 %971
        %973 = vrot.lane.b32.xlu0 %v902, 4
        %v974 = vpop.permute.xlu0 %973
        %975 = vrot.lane.b32.xlu0 %v903, 4
        %v976 = vpop.permute.xlu0 %975
        %977 = vrot.lane.b32.xlu0 %v904, 4
        %v978 = vpop.permute.xlu0 %977
        %979 = vrot.lane.b32.xlu0 %v905, 4
        %v980 = vpop.permute.xlu0 %979
        %981 = vrot.lane.b32.xlu0 %v906, 4
        %v982 = vpop.permute.xlu0 %981
        %983 = vrot.lane.b32.xlu0 %v907, 4
        %v984 = vpop.permute.xlu0 %983
        %985 = vrot.lane.b32.xlu0 %v908, 4
        %v986 = vpop.permute.xlu0 %985
        %987 = vrot.lane.b32.xlu0 %v909, 4
        %v988 = vpop.permute.xlu0 %987
        %989 = vrot.lane.b32.xlu0 %v910, 4
        %v990 = vpop.permute.xlu0 %989
        %991 = vrot.lane.b32.xlu0 %v911, 4
        %v992 = vpop.permute.xlu0 %991
        %993 = vrot.lane.b32.xlu0 %v912, 4
        %v994 = vpop.permute.xlu0 %993
        %995 = vrot.lane.b32.xlu0 %v913, 4
        %v996 = vpop.permute.xlu0 %995
        %997 = vrot.lane.b32.xlu0 %v914, 4
        %v998 = vpop.permute.xlu0 %997
        %999 = vrot.lane.b32.xlu0 %v915, 4
        %v1000 = vpop.permute.xlu0 %999
        %1001 = vrot.lane.b32.xlu0 %v916, 4
        %v1002 = vpop.permute.xlu0 %1001
        %1003 = vrot.lane.b32.xlu0 %v917, 4
        %v1004 = vpop.permute.xlu0 %1003
        %1005 = vrot.lane.b32.xlu0 %v918, 4
        %v1006 = vpop.permute.xlu0 %1005
        %1007 = vrot.lane.b32.xlu0 %v919, 4
        %v1008 = vpop.permute.xlu0 %1007
        %1009 = vrot.lane.b32.xlu0 %v920, 4
        %v1010 = vpop.permute.xlu0 %1009
        %1011 = vrot.lane.b32.xlu0 %v921, 4
        %v1012 = vpop.permute.xlu0 %1011
        %1013 = vrot.lane.b32.xlu0 %v922, 4
        %v1014 = vpop.permute.xlu0 %1013
        %1015 = vrot.lane.b32.xlu0 %v923, 4
        %v1016 = vpop.permute.xlu0 %1015
        %1017 = vrot.lane.b32.xlu0 %v924, 4
        %v1018 = vpop.permute.xlu0 %1017
        %1019 = vrot.lane.b32.xlu0 %v925, 4
        %v1020 = vpop.permute.xlu0 %1019
        %1021 = vrot.lane.b32.xlu0 %v926, 4
        %v1022 = vpop.permute.xlu0 %1021
        %1055 = vst.msk [vmem:[#allocation4] sm:$0xff] %vm571, %v960
        %1056 = vst.msk [vmem:[#allocation4 + $0x8] sm:$0xff] %vm571, %v962
        %1057 = vst.msk [vmem:[#allocation4 + $0x10] sm:$0xff] %vm571, %v964
        %1058 = vst.msk [vmem:[#allocation4 + $0x18] sm:$0xff] %vm571, %v966
        %1059 = vst.msk [vmem:[#allocation4 + $0x20] sm:$0xff] %vm571, %v968
        %1060 = vst.msk [vmem:[#allocation4 + $0x28] sm:$0xff] %vm571, %v970
        %1061 = vst.msk [vmem:[#allocation4 + $0x30] sm:$0xff] %vm571, %v972
        %1062 = vst.msk [vmem:[#allocation4 + $0x38] sm:$0xff] %vm571, %v974
        %1063 = vst.msk [vmem:[#allocation4 + $0x40] sm:$0xff] %vm571, %v976
        %1064 = vst.msk [vmem:[#allocation4 + $0x48] sm:$0xff] %vm571, %v978
        %1065 = vst.msk [vmem:[#allocation4 + $0x50] sm:$0xff] %vm571, %v980
        %1066 = vst.msk [vmem:[#allocation4 + $0x58] sm:$0xff] %vm571, %v982
        %1067 = vst.msk [vmem:[#allocation4 + $0x60] sm:$0xff] %vm571, %v984
        %1068 = vst.msk [vmem:[#allocation4 + $0x68] sm:$0xff] %vm571, %v986
        %1069 = vst.msk [vmem:[#allocation4 + $0x70] sm:$0xff] %vm571, %v988
        %1070 = vst.msk [vmem:[#allocation4 + $0x78] sm:$0xff] %vm571, %v990
        %1071 = vst.msk [vmem:[#allocation4 + $0x80] sm:$0xff] %vm571, %v992
        %1072 = vst.msk [vmem:[#allocation4 + $0x88] sm:$0xff] %vm571, %v994
        %1073 = vst.msk [vmem:[#allocation4 + $0x90] sm:$0xff] %vm571, %v996
        %1074 = vst.msk [vmem:[#allocation4 + $0x98] sm:$0xff] %vm571, %v998
        %1075 = vst.msk [vmem:[#allocation4 + $0xa0] sm:$0xff] %vm571, %v1000
        %1076 = vst.msk [vmem:[#allocation4 + $0xa8] sm:$0xff] %vm571, %v1002
        %1077 = vst.msk [vmem:[#allocation4 + $0xb0] sm:$0xff] %vm571, %v1004
        %1078 = vst.msk [vmem:[#allocation4 + $0xb8] sm:$0xff] %vm571, %v1006
        %1079 = vst.msk [vmem:[#allocation4 + $0xc0] sm:$0xff] %vm571, %v1008
        %1080 = vst.msk [vmem:[#allocation4 + $0xc8] sm:$0xff] %vm571, %v1010
        %1081 = vst.msk [vmem:[#allocation4 + $0xd0] sm:$0xff] %vm571, %v1012
        %1082 = vst.msk [vmem:[#allocation4 + $0xd8] sm:$0xff] %vm571, %v1014
        %1083 = vst.msk [vmem:[#allocation4 + $0xe0] sm:$0xff] %vm571, %v1016
        %1084 = vst.msk [vmem:[#allocation4 + $0xe8] sm:$0xff] %vm571, %v1018
        %1085 = vst.msk [vmem:[#allocation4 + $0xf0] sm:$0xff] %vm571, %v1020
        %1086 = vst.msk [vmem:[#allocation4 + $0xf8] sm:$0xff] %vm571, %v1022
        %v1087 = vld [vmem:[%s314 + $0x2] sm:$0xff]
        %v1088 = vld [vmem:[%s314 + $0xa] sm:$0xff]
        %v1089 = vld [vmem:[%s314 + $0x1a] sm:$0xff]
        %v1090 = vld [vmem:[%s314 + $0x22] sm:$0xff]
        %v1091 = vld [vmem:[%s314 + $0x32] sm:$0xff]
        %v1092 = vld [vmem:[%s314 + $0x3a] sm:$0xff]
        %v1093 = vld [vmem:[%s314 + $0x4a] sm:$0xff]
        %v1094 = vld [vmem:[%s314 + $0x52] sm:$0xff]
        %v1095 = vld [vmem:[%s314 + $0x62] sm:$0xff]
        %v1096 = vld [vmem:[%s314 + $0x6a] sm:$0xff]
        %v1097 = vld [vmem:[%s314 + $0x7a] sm:$0xff]
        %v1098 = vld [vmem:[%s314 + $0x82] sm:$0xff]
        %v1099 = vld [vmem:[%s314 + $0x92] sm:$0xff]
        %v1100 = vld [vmem:[%s314 + $0x9a] sm:$0xff]
        %v1101 = vld [vmem:[%s314 + $0xaa] sm:$0xff]
        %v1102 = vld [vmem:[%s314 + $0xb2] sm:$0xff]
        %v1103 = vld [vmem:[%s314 + $0xc2] sm:$0xff]
        %v1104 = vld [vmem:[%s314 + $0xca] sm:$0xff]
        %v1105 = vld [vmem:[%s314 + $0xda] sm:$0xff]
        %v1106 = vld [vmem:[%s314 + $0xe2] sm:$0xff]
        %v1107 = vld [vmem:[%s314 + $0xf2] sm:$0xff]
        %v1108 = vld [vmem:[%s314 + $0xfa] sm:$0xff]
        %v1109 = vld [vmem:[%s314 + $0x10a] sm:$0xff]
        %v1110 = vld [vmem:[%s314 + $0x112] sm:$0xff]
        %v1111 = vld [vmem:[%s314 + $0x122] sm:$0xff]
        %v1112 = vld [vmem:[%s314 + $0x12a] sm:$0xff]
        %v1113 = vld [vmem:[%s314 + $0x13a] sm:$0xff]
        %v1114 = vld [vmem:[%s314 + $0x142] sm:$0xff]
        %v1115 = vld [vmem:[%s314 + $0x152] sm:$0xff]
        %v1116 = vld [vmem:[%s314 + $0x15a] sm:$0xff]
        %v1117 = vld [vmem:[%s314 + $0x16a] sm:$0xff]
        %v1118 = vld [vmem:[%s314 + $0x172] sm:$0xff]
        %1151 = vrot.lane.b32.xlu0 %v1087, 8
        %v1152 = vpop.permute.xlu0 %1151
        %1153 = vrot.lane.b32.xlu0 %v1088, 8
        %v1154 = vpop.permute.xlu0 %1153
        %1155 = vrot.lane.b32.xlu0 %v1089, 8
        %v1156 = vpop.permute.xlu0 %1155
        %1157 = vrot.lane.b32.xlu0 %v1090, 8
        %v1158 = vpop.permute.xlu0 %1157
        %1159 = vrot.lane.b32.xlu0 %v1091, 8
        %v1160 = vpop.permute.xlu0 %1159
        %1161 = vrot.lane.b32.xlu0 %v1092, 8
        %v1162 = vpop.permute.xlu0 %1161
        %1163 = vrot.lane.b32.xlu0 %v1093, 8
        %v1164 = vpop.permute.xlu0 %1163
        %1165 = vrot.lane.b32.xlu0 %v1094, 8
        %v1166 = vpop.permute.xlu0 %1165
        %1167 = vrot.lane.b32.xlu0 %v1095, 8
        %v1168 = vpop.permute.xlu0 %1167
        %1169 = vrot.lane.b32.xlu0 %v1096, 8
        %v1170 = vpop.permute.xlu0 %1169
        %1171 = vrot.lane.b32.xlu0 %v1097, 8
        %v1172 = vpop.permute.xlu0 %1171
        %1173 = vrot.lane.b32.xlu0 %v1098, 8
        %v1174 = vpop.permute.xlu0 %1173
        %1175 = vrot.lane.b32.xlu0 %v1099, 8
        %v1176 = vpop.permute.xlu0 %1175
        %1177 = vrot.lane.b32.xlu0 %v1100, 8
        %v1178 = vpop.permute.xlu0 %1177
        %1179 = vrot.lane.b32.xlu0 %v1101, 8
        %v1180 = vpop.permute.xlu0 %1179
        %1181 = vrot.lane.b32.xlu0 %v1102, 8
        %v1182 = vpop.permute.xlu0 %1181
        %1183 = vrot.lane.b32.xlu0 %v1103, 8
        %v1184 = vpop.permute.xlu0 %1183
        %1185 = vrot.lane.b32.xlu0 %v1104, 8
        %v1186 = vpop.permute.xlu0 %1185
        %1187 = vrot.lane.b32.xlu0 %v1105, 8
        %v1188 = vpop.permute.xlu0 %1187
        %1189 = vrot.lane.b32.xlu0 %v1106, 8
        %v1190 = vpop.permute.xlu0 %1189
        %1191 = vrot.lane.b32.xlu0 %v1107, 8
        %v1192 = vpop.permute.xlu0 %1191
        %1193 = vrot.lane.b32.xlu0 %v1108, 8
        %v1194 = vpop.permute.xlu0 %1193
        %1195 = vrot.lane.b32.xlu0 %v1109, 8
        %v1196 = vpop.permute.xlu0 %1195
        %1197 = vrot.lane.b32.xlu0 %v1110, 8
        %v1198 = vpop.permute.xlu0 %1197
        %1199 = vrot.lane.b32.xlu0 %v1111, 8
        %v1200 = vpop.permute.xlu0 %1199
        %1201 = vrot.lane.b32.xlu0 %v1112, 8
        %v1202 = vpop.permute.xlu0 %1201
        %1203 = vrot.lane.b32.xlu0 %v1113, 8
        %v1204 = vpop.permute.xlu0 %1203
        %1205 = vrot.lane.b32.xlu0 %v1114, 8
        %v1206 = vpop.permute.xlu0 %1205
        %1207 = vrot.lane.b32.xlu0 %v1115, 8
        %v1208 = vpop.permute.xlu0 %1207
        %1209 = vrot.lane.b32.xlu0 %v1116, 8
        %v1210 = vpop.permute.xlu0 %1209
        %1211 = vrot.lane.b32.xlu0 %v1117, 8
        %v1212 = vpop.permute.xlu0 %1211
        %1213 = vrot.lane.b32.xlu0 %v1118, 8
        %v1214 = vpop.permute.xlu0 %1213
        %1247 = vst.msk [vmem:[#allocation4] sm:$0xff] %vm764, %v1152
        %1248 = vst.msk [vmem:[#allocation4 + $0x8] sm:$0xff] %vm764, %v1154
        %1249 = vst.msk [vmem:[#allocation4 + $0x10] sm:$0xff] %vm764, %v1156
        %1250 = vst.msk [vmem:[#allocation4 + $0x18] sm:$0xff] %vm764, %v1158
        %1251 = vst.msk [vmem:[#allocation4 + $0x20] sm:$0xff] %vm764, %v1160
        %1252 = vst.msk [vmem:[#allocation4 + $0x28] sm:$0xff] %vm764, %v1162
        %1253 = vst.msk [vmem:[#allocation4 + $0x30] sm:$0xff] %vm764, %v1164
        %1254 = vst.msk [vmem:[#allocation4 + $0x38] sm:$0xff] %vm764, %v1166
        %1255 = vst.msk [vmem:[#allocation4 + $0x40] sm:$0xff] %vm764, %v1168
        %1256 = vst.msk [vmem:[#allocation4 + $0x48] sm:$0xff] %vm764, %v1170
        %1257 = vst.msk [vmem:[#allocation4 + $0x50] sm:$0xff] %vm764, %v1172
        %1258 = vst.msk [vmem:[#allocation4 + $0x58] sm:$0xff] %vm764, %v1174
        %1259 = vst.msk [vmem:[#allocation4 + $0x60] sm:$0xff] %vm764, %v1176
        %1260 = vst.msk [vmem:[#allocation4 + $0x68] sm:$0xff] %vm764, %v1178
        %1261 = vst.msk [vmem:[#allocation4 + $0x70] sm:$0xff] %vm764, %v1180
        %1262 = vst.msk [vmem:[#allocation4 + $0x78] sm:$0xff] %vm764, %v1182
        %1263 = vst.msk [vmem:[#allocation4 + $0x80] sm:$0xff] %vm764, %v1184
        %1264 = vst.msk [vmem:[#allocation4 + $0x88] sm:$0xff] %vm764, %v1186
        %1265 = vst.msk [vmem:[#allocation4 + $0x90] sm:$0xff] %vm764, %v1188
        %1266 = vst.msk [vmem:[#allocation4 + $0x98] sm:$0xff] %vm764, %v1190
        %1267 = vst.msk [vmem:[#allocation4 + $0xa0] sm:$0xff] %vm764, %v1192
        %1268 = vst.msk [vmem:[#allocation4 + $0xa8] sm:$0xff] %vm764, %v1194
        %1269 = vst.msk [vmem:[#allocation4 + $0xb0] sm:$0xff] %vm764, %v1196
        %1270 = vst.msk [vmem:[#allocation4 + $0xb8] sm:$0xff] %vm764, %v1198
        %1271 = vst.msk [vmem:[#allocation4 + $0xc0] sm:$0xff] %vm764, %v1200
        %1272 = vst.msk [vmem:[#allocation4 + $0xc8] sm:$0xff] %vm764, %v1202
        %1273 = vst.msk [vmem:[#allocation4 + $0xd0] sm:$0xff] %vm764, %v1204
        %1274 = vst.msk [vmem:[#allocation4 + $0xd8] sm:$0xff] %vm764, %v1206
        %1275 = vst.msk [vmem:[#allocation4 + $0xe0] sm:$0xff] %vm764, %v1208
        %1276 = vst.msk [vmem:[#allocation4 + $0xe8] sm:$0xff] %vm764, %v1210
        %1277 = vst.msk [vmem:[#allocation4 + $0xf0] sm:$0xff] %vm764, %v1212
        %1278 = vst.msk [vmem:[#allocation4 + $0xf8] sm:$0xff] %vm764, %v1214
        %v1279 = vld [vmem:[#allocation4] sm:$0xff]
        %v1280 = vld [vmem:[#allocation4 + $0x8] sm:$0xff]
        %v1281 = vld [vmem:[#allocation4 + $0x10] sm:$0xff]
        %v1282 = vld [vmem:[#allocation4 + $0x18] sm:$0xff]
        %v1283 = vld [vmem:[#allocation4 + $0x20] sm:$0xff]
        %v1284 = vld [vmem:[#allocation4 + $0x28] sm:$0xff]
        %v1285 = vld [vmem:[#allocation4 + $0x30] sm:$0xff]
        %v1286 = vld [vmem:[#allocation4 + $0x38] sm:$0xff]
        %v1287 = vld [vmem:[#allocation4 + $0x40] sm:$0xff]
        %v1288 = vld [vmem:[#allocation4 + $0x48] sm:$0xff]
        %v1289 = vld [vmem:[#allocation4 + $0x50] sm:$0xff]
        %v1290 = vld [vmem:[#allocation4 + $0x58] sm:$0xff]
        %v1291 = vld [vmem:[#allocation4 + $0x60] sm:$0xff]
        %v1292 = vld [vmem:[#allocation4 + $0x68] sm:$0xff]
        %v1293 = vld [vmem:[#allocation4 + $0x70] sm:$0xff]
        %v1294 = vld [vmem:[#allocation4 + $0x78] sm:$0xff]
        %v1295 = vld [vmem:[#allocation4 + $0x80] sm:$0xff]
        %v1296 = vld [vmem:[#allocation4 + $0x88] sm:$0xff]
        %v1297 = vld [vmem:[#allocation4 + $0x90] sm:$0xff]
        %v1298 = vld [vmem:[#allocation4 + $0x98] sm:$0xff]
        %v1299 = vld [vmem:[#allocation4 + $0xa0] sm:$0xff]
        %v1300 = vld [vmem:[#allocation4 + $0xa8] sm:$0xff]
        %v1301 = vld [vmem:[#allocation4 + $0xb0] sm:$0xff]
        %v1302 = vld [vmem:[#allocation4 + $0xb8] sm:$0xff]
        %v1303 = vld [vmem:[#allocation4 + $0xc0] sm:$0xff]
        %v1304 = vld [vmem:[#allocation4 + $0xc8] sm:$0xff]
        %v1305 = vld [vmem:[#allocation4 + $0xd0] sm:$0xff]
        %v1306 = vld [vmem:[#allocation4 + $0xd8] sm:$0xff]
        %v1307 = vld [vmem:[#allocation4 + $0xe0] sm:$0xff]
        %v1308 = vld [vmem:[#allocation4 + $0xe8] sm:$0xff]
        %v1309 = vld [vmem:[#allocation4 + $0xf0] sm:$0xff]
        %v1310 = vld [vmem:[#allocation4 + $0xf8] sm:$0xff]
        %s1311 = scalar_lea.vmem %s1, 16
        %v1312 = vld [vmem:[%s1311] sm:$0xff]
        %v1313 = vld [vmem:[%s1311 + $0x8] sm:$0xf]
        %vm1314 = vcmask 97280
        %v1316 = vsel %vm1314, %v1279, 0
        %v1319 = vsel %vm1314, %v1280, 0
        %v1322 = vsel %vm1314, %v1281, 0
        %v1325 = vsel %vm1314, %v1282, 0
        %v1328 = vsel %vm1314, %v1283, 0
        %v1331 = vsel %vm1314, %v1284, 0
        %v1334 = vsel %vm1314, %v1285, 0
        %v1337 = vsel %vm1314, %v1286, 0
        %v1340 = vsel %vm1314, %v1287, 0
        %v1343 = vsel %vm1314, %v1288, 0
        %v1346 = vsel %vm1314, %v1289, 0
        %v1349 = vsel %vm1314, %v1290, 0
        %v1352 = vsel %vm1314, %v1291, 0
        %v1355 = vsel %vm1314, %v1292, 0
        %v1358 = vsel %vm1314, %v1293, 0
        %v1361 = vsel %vm1314, %v1294, 0
        %v1364 = vsel %vm1314, %v1295, 0
        %v1367 = vsel %vm1314, %v1296, 0
        %v1370 = vsel %vm1314, %v1297, 0
        %v1373 = vsel %vm1314, %v1298, 0
        %v1376 = vsel %vm1314, %v1299, 0
        %v1379 = vsel %vm1314, %v1300, 0
        %v1382 = vsel %vm1314, %v1301, 0
        %v1385 = vsel %vm1314, %v1302, 0
        %v1388 = vsel %vm1314, %v1303, 0
        %v1391 = vsel %vm1314, %v1304, 0
        %v1394 = vsel %vm1314, %v1305, 0
        %v1397 = vsel %vm1314, %v1306, 0
        %v1400 = vsel %vm1314, %v1307, 0
        %v1403 = vsel %vm1314, %v1308, 0
        %v1406 = vsel %vm1314, %v1309, 0
        %v1409 = vsel %vm1314, %v1310, 0
        %vm1411 = vcmask 1043456
        %v1413 = vsel %vm1411, %v1313, 0
        %1415 = vmatpush.msra.mxu0 0.0
        %1416 = vmatpush.msra.mxu0 0.0
        %1417 = vmatpush.msra.mxu0 0.0
        %1418 = vmatpush.msra.mxu0 0.0
        %1419 = vmatpush.msra.mxu0 0.0
        %1420 = vmatpush.msra.mxu0 0.0
        %1421 = vmatpush.msra.mxu0 0.0
        %1422 = vmatpush.msra.mxu0 0.0
        %1423 = vmatpush.msra.mxu0 0.0
        %1424 = vmatpush.msra.mxu0 0.0
        %1425 = vmatpush.msra.mxu0 0.0
        %1426 = vmatpush.msra.mxu0 0.0
        %1427 = vmatpush.msra.mxu0 0.0
        %1428 = vmatpush.msra.mxu0 0.0
        %1429 = vmatpush.msra.mxu0 %v1413
        %1430 = vmatpush.msra.mxu0 %v1312
        %1431 = vmatmul.f32.gmra.mxu0 %v1316
        %v1432 = vpop.f32.mrf.mxu0
        %v1433 = vadd.f32 0.0, %v1432
        %1434 = vmatmul.f32.gmra.mxu0 %v1319
        %v1435 = vpop.f32.mrf.mxu0
        %v1436 = vadd.f32 0.0, %v1435
        %1437 = vmatmul.f32.gmra.mxu0 %v1322
        %v1438 = vpop.f32.mrf.mxu0
        %v1439 = vadd.f32 0.0, %v1438
        %1440 = vmatmul.f32.gmra.mxu0 %v1325
        %v1441 = vpop.f32.mrf.mxu0
        %v1442 = vadd.f32 0.0, %v1441
        %1443 = vmatmul.f32.gmra.mxu0 %v1328
        %v1444 = vpop.f32.mrf.mxu0
        %v1445 = vadd.f32 0.0, %v1444
        %1446 = vmatmul.f32.gmra.mxu0 %v1331
        %v1447 = vpop.f32.mrf.mxu0
        %v1448 = vadd.f32 0.0, %v1447
        %1449 = vmatmul.f32.gmra.mxu0 %v1334
        %v1450 = vpop.f32.mrf.mxu0
        %v1451 = vadd.f32 0.0, %v1450
        %1452 = vmatmul.f32.gmra.mxu0 %v1337
        %v1453 = vpop.f32.mrf.mxu0
        %v1454 = vadd.f32 0.0, %v1453
        %1455 = vmatmul.f32.gmra.mxu0 %v1340
        %v1456 = vpop.f32.mrf.mxu0
        %v1457 = vadd.f32 0.0, %v1456
        %1458 = vmatmul.f32.gmra.mxu0 %v1343
        %v1459 = vpop.f32.mrf.mxu0
        %v1460 = vadd.f32 0.0, %v1459
        %1461 = vmatmul.f32.gmra.mxu0 %v1346
        %v1462 = vpop.f32.mrf.mxu0
        %v1463 = vadd.f32 0.0, %v1462
        %1464 = vmatmul.f32.gmra.mxu0 %v1349
        %v1465 = vpop.f32.mrf.mxu0
        %v1466 = vadd.f32 0.0, %v1465
        %1467 = vmatmul.f32.gmra.mxu0 %v1352
        %v1468 = vpop.f32.mrf.mxu0
        %v1469 = vadd.f32 0.0, %v1468
        %1470 = vmatmul.f32.gmra.mxu0 %v1355
        %v1471 = vpop.f32.mrf.mxu0
        %v1472 = vadd.f32 0.0, %v1471
        %1473 = vmatmul.f32.gmra.mxu0 %v1358
        %v1474 = vpop.f32.mrf.mxu0
        %v1475 = vadd.f32 0.0, %v1474
        %1476 = vmatmul.f32.gmra.mxu0 %v1361
        %v1477 = vpop.f32.mrf.mxu0
        %v1478 = vadd.f32 0.0, %v1477
        %1479 = vmatmul.f32.gmra.mxu0 %v1364
        %v1480 = vpop.f32.mrf.mxu0
        %v1481 = vadd.f32 0.0, %v1480
        %1482 = vmatmul.f32.gmra.mxu0 %v1367
        %v1483 = vpop.f32.mrf.mxu0
        %v1484 = vadd.f32 0.0, %v1483
        %1485 = vmatmul.f32.gmra.mxu0 %v1370
        %v1486 = vpop.f32.mrf.mxu0
        %v1487 = vadd.f32 0.0, %v1486
        %1488 = vmatmul.f32.gmra.mxu0 %v1373
        %v1489 = vpop.f32.mrf.mxu0
        %v1490 = vadd.f32 0.0, %v1489
        %1491 = vmatmul.f32.gmra.mxu0 %v1376
        %v1492 = vpop.f32.mrf.mxu0
        %v1493 = vadd.f32 0.0, %v1492
        %1494 = vmatmul.f32.gmra.mxu0 %v1379
        %v1495 = vpop.f32.mrf.mxu0
        %v1496 = vadd.f32 0.0, %v1495
        %1497 = vmatmul.f32.gmra.mxu0 %v1382
        %v1498 = vpop.f32.mrf.mxu0
        %v1499 = vadd.f32 0.0, %v1498
        %1500 = vmatmul.f32.gmra.mxu0 %v1385
        %v1501 = vpop.f32.mrf.mxu0
        %v1502 = vadd.f32 0.0, %v1501
        %1503 = vmatmul.f32.gmra.mxu0 %v1388
        %v1504 = vpop.f32.mrf.mxu0
        %v1505 = vadd.f32 0.0, %v1504
        %1506 = vmatmul.f32.gmra.mxu0 %v1391
        %v1507 = vpop.f32.mrf.mxu0
        %v1508 = vadd.f32 0.0, %v1507
        %1509 = vmatmul.f32.gmra.mxu0 %v1394
        %v1510 = vpop.f32.mrf.mxu0
        %v1511 = vadd.f32 0.0, %v1510
        %1512 = vmatmul.f32.gmra.mxu0 %v1397
        %v1513 = vpop.f32.mrf.mxu0
        %v1514 = vadd.f32 0.0, %v1513
        %1515 = vmatmul.f32.gmra.mxu0 %v1400
        %v1516 = vpop.f32.mrf.mxu0
        %v1517 = vadd.f32 0.0, %v1516
        %1518 = vmatmul.f32.gmra.mxu0 %v1403
        %v1519 = vpop.f32.mrf.mxu0
        %v1520 = vadd.f32 0.0, %v1519
        %1521 = vmatmul.f32.gmra.mxu0 %v1406
        %v1522 = vpop.f32.mrf.mxu0
        %v1523 = vadd.f32 0.0, %v1522
        %1524 = vmatmul.f32.gmra.mxu0 %v1409
        %v1525 = vpop.f32.mrf.mxu0
        %v1526 = vadd.f32 0.0, %v1525
        %1527 = vdwg.mxu0
        %v1529 = vsel %vm1314, %v797, 0
        %v1532 = vsel %vm1314, %v798, 0
        %v1535 = vsel %vm1314, %v799, 0
        %v1538 = vsel %vm1314, %v800, 0
        %v1541 = vsel %vm1314, %v801, 0
        %v1544 = vsel %vm1314, %v802, 0
        %v1547 = vsel %vm1314, %v803, 0
        %v1550 = vsel %vm1314, %v804, 0
        %v1553 = vsel %vm1314, %v805, 0
        %v1556 = vsel %vm1314, %v806, 0
        %v1559 = vsel %vm1314, %v807, 0
        %v1562 = vsel %vm1314, %v808, 0
        %v1565 = vsel %vm1314, %v809, 0
        %v1568 = vsel %vm1314, %v810, 0
        %v1571 = vsel %vm1314, %v811, 0
        %v1574 = vsel %vm1314, %v812, 0
        %v1577 = vsel %vm1314, %v813, 0
        %v1580 = vsel %vm1314, %v814, 0
        %v1583 = vsel %vm1314, %v815, 0
        %v1586 = vsel %vm1314, %v816, 0
        %v1589 = vsel %vm1314, %v817, 0
        %v1592 = vsel %vm1314, %v818, 0
        %v1595 = vsel %vm1314, %v819, 0
        %v1598 = vsel %vm1314, %v820, 0
        %v1601 = vsel %vm1314, %v821, 0
        %v1604 = vsel %vm1314, %v822, 0
        %v1607 = vsel %vm1314, %v823, 0
        %v1610 = vsel %vm1314, %v824, 0
        %v1613 = vsel %vm1314, %v825, 0
        %v1616 = vsel %vm1314, %v826, 0
        %v1619 = vsel %vm1314, %v827, 0
        %v1622 = vsel %vm1314, %v828, 0
        %v1625 = vsel %vm1411, %v830, 0
        %1627 = vmatpush.msra.mxu0 0.0
        %1628 = vmatpush.msra.mxu0 0.0
        %1629 = vmatpush.msra.mxu0 0.0
        %1630 = vmatpush.msra.mxu0 0.0
        %1631 = vmatpush.msra.mxu0 0.0
        %1632 = vmatpush.msra.mxu0 0.0
        %1633 = vmatpush.msra.mxu0 0.0
        %1634 = vmatpush.msra.mxu0 0.0
        %1635 = vmatpush.msra.mxu0 0.0
        %1636 = vmatpush.msra.mxu0 0.0
        %1637 = vmatpush.msra.mxu0 0.0
        %1638 = vmatpush.msra.mxu0 0.0
        %1639 = vmatpush.msra.mxu0 0.0
        %1640 = vmatpush.msra.mxu0 0.0
        %1641 = vmatpush.msra.mxu0 %v1625
        %1642 = vmatpush.msra.mxu0 %v829
        %1643 = vmatmul.f32.gmra.mxu0 %v1529
        %v1644 = vpop.f32.mrf.mxu0
        %v1645 = vadd.f32 %v1433, %v1644
        %1646 = vmatmul.f32.gmra.mxu0 %v1532
        %v1647 = vpop.f32.mrf.mxu0
        %v1648 = vadd.f32 %v1436, %v1647
        %1649 = vmatmul.f32.gmra.mxu0 %v1535
        %v1650 = vpop.f32.mrf.mxu0
        %v1651 = vadd.f32 %v1439, %v1650
        %1652 = vmatmul.f32.gmra.mxu0 %v1538
        %v1653 = vpop.f32.mrf.mxu0
        %v1654 = vadd.f32 %v1442, %v1653
        %1655 = vmatmul.f32.gmra.mxu0 %v1541
        %v1656 = vpop.f32.mrf.mxu0
        %v1657 = vadd.f32 %v1445, %v1656
        %1658 = vmatmul.f32.gmra.mxu0 %v1544
        %v1659 = vpop.f32.mrf.mxu0
        %v1660 = vadd.f32 %v1448, %v1659
        %1661 = vmatmul.f32.gmra.mxu0 %v1547
        %v1662 = vpop.f32.mrf.mxu0
        %v1663 = vadd.f32 %v1451, %v1662
        %1664 = vmatmul.f32.gmra.mxu0 %v1550
        %v1665 = vpop.f32.mrf.mxu0
        %v1666 = vadd.f32 %v1454, %v1665
        %1667 = vmatmul.f32.gmra.mxu0 %v1553
        %v1668 = vpop.f32.mrf.mxu0
        %v1669 = vadd.f32 %v1457, %v1668
        %1670 = vmatmul.f32.gmra.mxu0 %v1556
        %v1671 = vpop.f32.mrf.mxu0
        %v1672 = vadd.f32 %v1460, %v1671
        %1673 = vmatmul.f32.gmra.mxu0 %v1559
        %v1674 = vpop.f32.mrf.mxu0
        %v1675 = vadd.f32 %v1463, %v1674
        %1676 = vmatmul.f32.gmra.mxu0 %v1562
        %v1677 = vpop.f32.mrf.mxu0
        %v1678 = vadd.f32 %v1466, %v1677
        %1679 = vmatmul.f32.gmra.mxu0 %v1565
        %v1680 = vpop.f32.mrf.mxu0
        %v1681 = vadd.f32 %v1469, %v1680
        %1682 = vmatmul.f32.gmra.mxu0 %v1568
        %v1683 = vpop.f32.mrf.mxu0
        %v1684 = vadd.f32 %v1472, %v1683
        %1685 = vmatmul.f32.gmra.mxu0 %v1571
        %v1686 = vpop.f32.mrf.mxu0
        %v1687 = vadd.f32 %v1475, %v1686
        %1688 = vmatmul.f32.gmra.mxu0 %v1574
        %v1689 = vpop.f32.mrf.mxu0
        %v1690 = vadd.f32 %v1478, %v1689
        %1691 = vmatmul.f32.gmra.mxu0 %v1577
        %v1692 = vpop.f32.mrf.mxu0
        %v1693 = vadd.f32 %v1481, %v1692
        %1694 = vmatmul.f32.gmra.mxu0 %v1580
        %v1695 = vpop.f32.mrf.mxu0
        %v1696 = vadd.f32 %v1484, %v1695
        %1697 = vmatmul.f32.gmra.mxu0 %v1583
        %v1698 = vpop.f32.mrf.mxu0
        %v1699 = vadd.f32 %v1487, %v1698
        %1700 = vmatmul.f32.gmra.mxu0 %v1586
        %v1701 = vpop.f32.mrf.mxu0
        %v1702 = vadd.f32 %v1490, %v1701
        %1703 = vmatmul.f32.gmra.mxu0 %v1589
        %v1704 = vpop.f32.mrf.mxu0
        %v1705 = vadd.f32 %v1493, %v1704
        %1706 = vmatmul.f32.gmra.mxu0 %v1592
        %v1707 = vpop.f32.mrf.mxu0
        %v1708 = vadd.f32 %v1496, %v1707
        %1709 = vmatmul.f32.gmra.mxu0 %v1595
        %v1710 = vpop.f32.mrf.mxu0
        %v1711 = vadd.f32 %v1499, %v1710
        %1712 = vmatmul.f32.gmra.mxu0 %v1598
        %v1713 = vpop.f32.mrf.mxu0
        %v1714 = vadd.f32 %v1502, %v1713
        %1715 = vmatmul.f32.gmra.mxu0 %v1601
        %v1716 = vpop.f32.mrf.mxu0
        %v1717 = vadd.f32 %v1505, %v1716
        %1718 = vmatmul.f32.gmra.mxu0 %v1604
        %v1719 = vpop.f32.mrf.mxu0
        %v1720 = vadd.f32 %v1508, %v1719
        %1721 = vmatmul.f32.gmra.mxu0 %v1607
        %v1722 = vpop.f32.mrf.mxu0
        %v1723 = vadd.f32 %v1511, %v1722
        %1724 = vmatmul.f32.gmra.mxu0 %v1610
        %v1725 = vpop.f32.mrf.mxu0
        %v1726 = vadd.f32 %v1514, %v1725
        %1727 = vmatmul.f32.gmra.mxu0 %v1613
        %v1728 = vpop.f32.mrf.mxu0
        %v1729 = vadd.f32 %v1517, %v1728
        %1730 = vmatmul.f32.gmra.mxu0 %v1616
        %v1731 = vpop.f32.mrf.mxu0
        %v1732 = vadd.f32 %v1520, %v1731
        %1733 = vmatmul.f32.gmra.mxu0 %v1619
        %v1734 = vpop.f32.mrf.mxu0
        %v1735 = vadd.f32 %v1523, %v1734
        %1736 = vmatmul.f32.gmra.mxu0 %v1622
        %v1737 = vpop.f32.mrf.mxu0
        %v1738 = vadd.f32 %v1526, %v1737
        %1739 = vdwg.mxu0
        %s1740 = scalar_lea.vmem [#allocation2], 48
        %v1741 = vld [vmem:[%s1740] sm:$0xff]
        %v1742 = vld [vmem:[%s1740 + $0x8] sm:$0xff]
        %v1743 = vld [vmem:[%s1740 + $0x18] sm:$0xff]
        %v1744 = vld [vmem:[%s1740 + $0x20] sm:$0xff]
        %v1745 = vld [vmem:[%s1740 + $0x30] sm:$0xff]
        %v1746 = vld [vmem:[%s1740 + $0x38] sm:$0xff]
        %v1747 = vld [vmem:[%s1740 + $0x48] sm:$0xff]
        %v1748 = vld [vmem:[%s1740 + $0x50] sm:$0xff]
        %v1749 = vld [vmem:[%s1740 + $0x60] sm:$0xff]
        %v1750 = vld [vmem:[%s1740 + $0x68] sm:$0xff]
        %v1751 = vld [vmem:[%s1740 + $0x78] sm:$0xff]
        %v1752 = vld [vmem:[%s1740 + $0x80] sm:$0xff]
        %v1753 = vld [vmem:[%s1740 + $0x90] sm:$0xff]
        %v1754 = vld [vmem:[%s1740 + $0x98] sm:$0xff]
        %v1755 = vld [vmem:[%s1740 + $0xa8] sm:$0xff]
        %v1756 = vld [vmem:[%s1740 + $0xb0] sm:$0xff]
        %v1757 = vld [vmem:[%s1740 + $0xc0] sm:$0xff]
        %v1758 = vld [vmem:[%s1740 + $0xc8] sm:$0xff]
        %v1759 = vld [vmem:[%s1740 + $0xd8] sm:$0xff]
        %v1760 = vld [vmem:[%s1740 + $0xe0] sm:$0xff]
        %v1761 = vld [vmem:[%s1740 + $0xf0] sm:$0xff]
        %v1762 = vld [vmem:[%s1740 + $0xf8] sm:$0xff]
        %v1763 = vld [vmem:[%s1740 + $0x108] sm:$0xff]
        %v1764 = vld [vmem:[%s1740 + $0x110] sm:$0xff]
        %v1765 = vld [vmem:[%s1740 + $0x120] sm:$0xff]
        %v1766 = vld [vmem:[%s1740 + $0x128] sm:$0xff]
        %v1767 = vld [vmem:[%s1740 + $0x138] sm:$0xff]
        %v1768 = vld [vmem:[%s1740 + $0x140] sm:$0xff]
        %v1769 = vld [vmem:[%s1740 + $0x150] sm:$0xff]
        %v1770 = vld [vmem:[%s1740 + $0x158] sm:$0xff]
        %v1771 = vld [vmem:[%s1740 + $0x168] sm:$0xff]
        %v1772 = vld [vmem:[%s1740 + $0x170] sm:$0xff]
        %1773 = vst.msk [vmem:[#allocation3] sm:$0xff] %vm236, %v1741
        %1774 = vst.msk [vmem:[#allocation3 + $0x8] sm:$0xff] %vm236, %v1742
        %1775 = vst.msk [vmem:[#allocation3 + $0x10] sm:$0xff] %vm236, %v1743
        %1776 = vst.msk [vmem:[#allocation3 + $0x18] sm:$0xff] %vm236, %v1744
        %1777 = vst.msk [vmem:[#allocation3 + $0x20] sm:$0xff] %vm236, %v1745
        %1778 = vst.msk [vmem:[#allocation3 + $0x28] sm:$0xff] %vm236, %v1746
        %1779 = vst.msk [vmem:[#allocation3 + $0x30] sm:$0xff] %vm236, %v1747
        %1780 = vst.msk [vmem:[#allocation3 + $0x38] sm:$0xff] %vm236, %v1748
        %1781 = vst.msk [vmem:[#allocation3 + $0x40] sm:$0xff] %vm236, %v1749
        %1782 = vst.msk [vmem:[#allocation3 + $0x48] sm:$0xff] %vm236, %v1750
        %1783 = vst.msk [vmem:[#allocation3 + $0x50] sm:$0xff] %vm236, %v1751
        %1784 = vst.msk [vmem:[#allocation3 + $0x58] sm:$0xff] %vm236, %v1752
        %1785 = vst.msk [vmem:[#allocation3 + $0x60] sm:$0xff] %vm236, %v1753
        %1786 = vst.msk [vmem:[#allocation3 + $0x68] sm:$0xff] %vm236, %v1754
        %1787 = vst.msk [vmem:[#allocation3 + $0x70] sm:$0xff] %vm236, %v1755
        %1788 = vst.msk [vmem:[#allocation3 + $0x78] sm:$0xff] %vm236, %v1756
        %1789 = vst.msk [vmem:[#allocation3 + $0x80] sm:$0xff] %vm236, %v1757
        %1790 = vst.msk [vmem:[#allocation3 + $0x88] sm:$0xff] %vm236, %v1758
        %1791 = vst.msk [vmem:[#allocation3 + $0x90] sm:$0xff] %vm236, %v1759
        %1792 = vst.msk [vmem:[#allocation3 + $0x98] sm:$0xff] %vm236, %v1760
        %1793 = vst.msk [vmem:[#allocation3 + $0xa0] sm:$0xff] %vm236, %v1761
        %1794 = vst.msk [vmem:[#allocation3 + $0xa8] sm:$0xff] %vm236, %v1762
        %1795 = vst.msk [vmem:[#allocation3 + $0xb0] sm:$0xff] %vm236, %v1763
        %1796 = vst.msk [vmem:[#allocation3 + $0xb8] sm:$0xff] %vm236, %v1764
        %1797 = vst.msk [vmem:[#allocation3 + $0xc0] sm:$0xff] %vm236, %v1765
        %1798 = vst.msk [vmem:[#allocation3 + $0xc8] sm:$0xff] %vm236, %v1766
        %1799 = vst.msk [vmem:[#allocation3 + $0xd0] sm:$0xff] %vm236, %v1767
        %1800 = vst.msk [vmem:[#allocation3 + $0xd8] sm:$0xff] %vm236, %v1768
        %1801 = vst.msk [vmem:[#allocation3 + $0xe0] sm:$0xff] %vm236, %v1769
        %1802 = vst.msk [vmem:[#allocation3 + $0xe8] sm:$0xff] %vm236, %v1770
        %1803 = vst.msk [vmem:[#allocation3 + $0xf0] sm:$0xff] %vm236, %v1771
        %1804 = vst.msk [vmem:[#allocation3 + $0xf8] sm:$0xff] %vm236, %v1772
        %v1805 = vld [vmem:[%s1740 + $0x1] sm:$0xff]
        %v1806 = vld [vmem:[%s1740 + $0x9] sm:$0xff]
        %v1807 = vld [vmem:[%s1740 + $0x19] sm:$0xff]
        %v1808 = vld [vmem:[%s1740 + $0x21] sm:$0xff]
        %v1809 = vld [vmem:[%s1740 + $0x31] sm:$0xff]
        %v1810 = vld [vmem:[%s1740 + $0x39] sm:$0xff]
        %v1811 = vld [vmem:[%s1740 + $0x49] sm:$0xff]
        %v1812 = vld [vmem:[%s1740 + $0x51] sm:$0xff]
        %v1813 = vld [vmem:[%s1740 + $0x61] sm:$0xff]
        %v1814 = vld [vmem:[%s1740 + $0x69] sm:$0xff]
        %v1815 = vld [vmem:[%s1740 + $0x79] sm:$0xff]
        %v1816 = vld [vmem:[%s1740 + $0x81] sm:$0xff]
        %v1817 = vld [vmem:[%s1740 + $0x91] sm:$0xff]
        %v1818 = vld [vmem:[%s1740 + $0x99] sm:$0xff]
        %v1819 = vld [vmem:[%s1740 + $0xa9] sm:$0xff]
        %v1820 = vld [vmem:[%s1740 + $0xb1] sm:$0xff]
        %v1821 = vld [vmem:[%s1740 + $0xc1] sm:$0xff]
        %v1822 = vld [vmem:[%s1740 + $0xc9] sm:$0xff]
        %v1823 = vld [vmem:[%s1740 + $0xd9] sm:$0xff]
        %v1824 = vld [vmem:[%s1740 + $0xe1] sm:$0xff]
        %v1825 = vld [vmem:[%s1740 + $0xf1] sm:$0xff]
        %v1826 = vld [vmem:[%s1740 + $0xf9] sm:$0xff]
        %v1827 = vld [vmem:[%s1740 + $0x109] sm:$0xff]
        %v1828 = vld [vmem:[%s1740 + $0x111] sm:$0xff]
        %v1829 = vld [vmem:[%s1740 + $0x121] sm:$0xff]
        %v1830 = vld [vmem:[%s1740 + $0x129] sm:$0xff]
        %v1831 = vld [vmem:[%s1740 + $0x139] sm:$0xff]
        %v1832 = vld [vmem:[%s1740 + $0x141] sm:$0xff]
        %v1833 = vld [vmem:[%s1740 + $0x151] sm:$0xff]
        %v1834 = vld [vmem:[%s1740 + $0x159] sm:$0xff]
        %v1835 = vld [vmem:[%s1740 + $0x169] sm:$0xff]
        %v1836 = vld [vmem:[%s1740 + $0x171] sm:$0xff]
        %1869 = vrot.lane.b32.xlu0 %v1805, 4
        %v1870 = vpop.permute.xlu0 %1869
        %1871 = vrot.lane.b32.xlu0 %v1806, 4
        %v1872 = vpop.permute.xlu0 %1871
        %1873 = vrot.lane.b32.xlu0 %v1807, 4
        %v1874 = vpop.permute.xlu0 %1873
        %1875 = vrot.lane.b32.xlu0 %v1808, 4
        %v1876 = vpop.permute.xlu0 %1875
        %1877 = vrot.lane.b32.xlu0 %v1809, 4
        %v1878 = vpop.permute.xlu0 %1877
        %1879 = vrot.lane.b32.xlu0 %v1810, 4
        %v1880 = vpop.permute.xlu0 %1879
        %1881 = vrot.lane.b32.xlu0 %v1811, 4
        %v1882 = vpop.permute.xlu0 %1881
        %1883 = vrot.lane.b32.xlu0 %v1812, 4
        %v1884 = vpop.permute.xlu0 %1883
        %1885 = vrot.lane.b32.xlu0 %v1813, 4
        %v1886 = vpop.permute.xlu0 %1885
        %1887 = vrot.lane.b32.xlu0 %v1814, 4
        %v1888 = vpop.permute.xlu0 %1887
        %1889 = vrot.lane.b32.xlu0 %v1815, 4
        %v1890 = vpop.permute.xlu0 %1889
        %1891 = vrot.lane.b32.xlu0 %v1816, 4
        %v1892 = vpop.permute.xlu0 %1891
        %1893 = vrot.lane.b32.xlu0 %v1817, 4
        %v1894 = vpop.permute.xlu0 %1893
        %1895 = vrot.lane.b32.xlu0 %v1818, 4
        %v1896 = vpop.permute.xlu0 %1895
        %1897 = vrot.lane.b32.xlu0 %v1819, 4
        %v1898 = vpop.permute.xlu0 %1897
        %1899 = vrot.lane.b32.xlu0 %v1820, 4
        %v1900 = vpop.permute.xlu0 %1899
        %1901 = vrot.lane.b32.xlu0 %v1821, 4
        %v1902 = vpop.permute.xlu0 %1901
        %1903 = vrot.lane.b32.xlu0 %v1822, 4
        %v1904 = vpop.permute.xlu0 %1903
        %1905 = vrot.lane.b32.xlu0 %v1823, 4
        %v1906 = vpop.permute.xlu0 %1905
        %1907 = vrot.lane.b32.xlu0 %v1824, 4
        %v1908 = vpop.permute.xlu0 %1907
        %1909 = vrot.lane.b32.xlu0 %v1825, 4
        %v1910 = vpop.permute.xlu0 %1909
        %1911 = vrot.lane.b32.xlu0 %v1826, 4
        %v1912 = vpop.permute.xlu0 %1911
        %1913 = vrot.lane.b32.xlu0 %v1827, 4
        %v1914 = vpop.permute.xlu0 %1913
        %1915 = vrot.lane.b32.xlu0 %v1828, 4
        %v1916 = vpop.permute.xlu0 %1915
        %1917 = vrot.lane.b32.xlu0 %v1829, 4
        %v1918 = vpop.permute.xlu0 %1917
        %1919 = vrot.lane.b32.xlu0 %v1830, 4
        %v1920 = vpop.permute.xlu0 %1919
        %1921 = vrot.lane.b32.xlu0 %v1831, 4
        %v1922 = vpop.permute.xlu0 %1921
        %1923 = vrot.lane.b32.xlu0 %v1832, 4
        %v1924 = vpop.permute.xlu0 %1923
        %1925 = vrot.lane.b32.xlu0 %v1833, 4
        %v1926 = vpop.permute.xlu0 %1925
        %1927 = vrot.lane.b32.xlu0 %v1834, 4
        %v1928 = vpop.permute.xlu0 %1927
        %1929 = vrot.lane.b32.xlu0 %v1835, 4
        %v1930 = vpop.permute.xlu0 %1929
        %1931 = vrot.lane.b32.xlu0 %v1836, 4
        %v1932 = vpop.permute.xlu0 %1931
        %1965 = vst.msk [vmem:[#allocation3] sm:$0xff] %vm571, %v1870
        %1966 = vst.msk [vmem:[#allocation3 + $0x8] sm:$0xff] %vm571, %v1872
        %1967 = vst.msk [vmem:[#allocation3 + $0x10] sm:$0xff] %vm571, %v1874
        %1968 = vst.msk [vmem:[#allocation3 + $0x18] sm:$0xff] %vm571, %v1876
        %1969 = vst.msk [vmem:[#allocation3 + $0x20] sm:$0xff] %vm571, %v1878
        %1970 = vst.msk [vmem:[#allocation3 + $0x28] sm:$0xff] %vm571, %v1880
        %1971 = vst.msk [vmem:[#allocation3 + $0x30] sm:$0xff] %vm571, %v1882
        %1972 = vst.msk [vmem:[#allocation3 + $0x38] sm:$0xff] %vm571, %v1884
        %1973 = vst.msk [vmem:[#allocation3 + $0x40] sm:$0xff] %vm571, %v1886
        %1974 = vst.msk [vmem:[#allocation3 + $0x48] sm:$0xff] %vm571, %v1888
        %1975 = vst.msk [vmem:[#allocation3 + $0x50] sm:$0xff] %vm571, %v1890
        %1976 = vst.msk [vmem:[#allocation3 + $0x58] sm:$0xff] %vm571, %v1892
        %1977 = vst.msk [vmem:[#allocation3 + $0x60] sm:$0xff] %vm571, %v1894
        %1978 = vst.msk [vmem:[#allocation3 + $0x68] sm:$0xff] %vm571, %v1896
        %1979 = vst.msk [vmem:[#allocation3 + $0x70] sm:$0xff] %vm571, %v1898
        %1980 = vst.msk [vmem:[#allocation3 + $0x78] sm:$0xff] %vm571, %v1900
        %1981 = vst.msk [vmem:[#allocation3 + $0x80] sm:$0xff] %vm571, %v1902
        %1982 = vst.msk [vmem:[#allocation3 + $0x88] sm:$0xff] %vm571, %v1904
        %1983 = vst.msk [vmem:[#allocation3 + $0x90] sm:$0xff] %vm571, %v1906
        %1984 = vst.msk [vmem:[#allocation3 + $0x98] sm:$0xff] %vm571, %v1908
        %1985 = vst.msk [vmem:[#allocation3 + $0xa0] sm:$0xff] %vm571, %v1910
        %1986 = vst.msk [vmem:[#allocation3 + $0xa8] sm:$0xff] %vm571, %v1912
        %1987 = vst.msk [vmem:[#allocation3 + $0xb0] sm:$0xff] %vm571, %v1914
        %1988 = vst.msk [vmem:[#allocation3 + $0xb8] sm:$0xff] %vm571, %v1916
        %1989 = vst.msk [vmem:[#allocation3 + $0xc0] sm:$0xff] %vm571, %v1918
        %1990 = vst.msk [vmem:[#allocation3 + $0xc8] sm:$0xff] %vm571, %v1920
        %1991 = vst.msk [vmem:[#allocation3 + $0xd0] sm:$0xff] %vm571, %v1922
        %1992 = vst.msk [vmem:[#allocation3 + $0xd8] sm:$0xff] %vm571, %v1924
        %1993 = vst.msk [vmem:[#allocation3 + $0xe0] sm:$0xff] %vm571, %v1926
        %1994 = vst.msk [vmem:[#allocation3 + $0xe8] sm:$0xff] %vm571, %v1928
        %1995 = vst.msk [vmem:[#allocation3 + $0xf0] sm:$0xff] %vm571, %v1930
        %1996 = vst.msk [vmem:[#allocation3 + $0xf8] sm:$0xff] %vm571, %v1932
        %v1997 = vld [vmem:[%s1740 + $0x2] sm:$0xff]
        %v1998 = vld [vmem:[%s1740 + $0xa] sm:$0xff]
        %v1999 = vld [vmem:[%s1740 + $0x1a] sm:$0xff]
        %v2000 = vld [vmem:[%s1740 + $0x22] sm:$0xff]
        %v2001 = vld [vmem:[%s1740 + $0x32] sm:$0xff]
        %v2002 = vld [vmem:[%s1740 + $0x3a] sm:$0xff]
        %v2003 = vld [vmem:[%s1740 + $0x4a] sm:$0xff]
        %v2004 = vld [vmem:[%s1740 + $0x52] sm:$0xff]
        %v2005 = vld [vmem:[%s1740 + $0x62] sm:$0xff]
        %v2006 = vld [vmem:[%s1740 + $0x6a] sm:$0xff]
        %v2007 = vld [vmem:[%s1740 + $0x7a] sm:$0xff]
        %v2008 = vld [vmem:[%s1740 + $0x82] sm:$0xff]
        %v2009 = vld [vmem:[%s1740 + $0x92] sm:$0xff]
        %v2010 = vld [vmem:[%s1740 + $0x9a] sm:$0xff]
        %v2011 = vld [vmem:[%s1740 + $0xaa] sm:$0xff]
        %v2012 = vld [vmem:[%s1740 + $0xb2] sm:$0xff]
        %v2013 = vld [vmem:[%s1740 + $0xc2] sm:$0xff]
        %v2014 = vld [vmem:[%s1740 + $0xca] sm:$0xff]
        %v2015 = vld [vmem:[%s1740 + $0xda] sm:$0xff]
        %v2016 = vld [vmem:[%s1740 + $0xe2] sm:$0xff]
        %v2017 = vld [vmem:[%s1740 + $0xf2] sm:$0xff]
        %v2018 = vld [vmem:[%s1740 + $0xfa] sm:$0xff]
        %v2019 = vld [vmem:[%s1740 + $0x10a] sm:$0xff]
        %v2020 = vld [vmem:[%s1740 + $0x112] sm:$0xff]
        %v2021 = vld [vmem:[%s1740 + $0x122] sm:$0xff]
        %v2022 = vld [vmem:[%s1740 + $0x12a] sm:$0xff]
        %v2023 = vld [vmem:[%s1740 + $0x13a] sm:$0xff]
        %v2024 = vld [vmem:[%s1740 + $0x142] sm:$0xff]
        %v2025 = vld [vmem:[%s1740 + $0x152] sm:$0xff]
        %v2026 = vld [vmem:[%s1740 + $0x15a] sm:$0xff]
        %v2027 = vld [vmem:[%s1740 + $0x16a] sm:$0xff]
        %v2028 = vld [vmem:[%s1740 + $0x172] sm:$0xff]
        %2061 = vrot.lane.b32.xlu0 %v1997, 8
        %v2062 = vpop.permute.xlu0 %2061
        %2063 = vrot.lane.b32.xlu0 %v1998, 8
        %v2064 = vpop.permute.xlu0 %2063
        %2065 = vrot.lane.b32.xlu0 %v1999, 8
        %v2066 = vpop.permute.xlu0 %2065
        %2067 = vrot.lane.b32.xlu0 %v2000, 8
        %v2068 = vpop.permute.xlu0 %2067
        %2069 = vrot.lane.b32.xlu0 %v2001, 8
        %v2070 = vpop.permute.xlu0 %2069
        %2071 = vrot.lane.b32.xlu0 %v2002, 8
        %v2072 = vpop.permute.xlu0 %2071
        %2073 = vrot.lane.b32.xlu0 %v2003, 8
        %v2074 = vpop.permute.xlu0 %2073
        %2075 = vrot.lane.b32.xlu0 %v2004, 8
        %v2076 = vpop.permute.xlu0 %2075
        %2077 = vrot.lane.b32.xlu0 %v2005, 8
        %v2078 = vpop.permute.xlu0 %2077
        %2079 = vrot.lane.b32.xlu0 %v2006, 8
        %v2080 = vpop.permute.xlu0 %2079
        %2081 = vrot.lane.b32.xlu0 %v2007, 8
        %v2082 = vpop.permute.xlu0 %2081
        %2083 = vrot.lane.b32.xlu0 %v2008, 8
        %v2084 = vpop.permute.xlu0 %2083
        %2085 = vrot.lane.b32.xlu0 %v2009, 8
        %v2086 = vpop.permute.xlu0 %2085
        %2087 = vrot.lane.b32.xlu0 %v2010, 8
        %v2088 = vpop.permute.xlu0 %2087
        %2089 = vrot.lane.b32.xlu0 %v2011, 8
        %v2090 = vpop.permute.xlu0 %2089
        %2091 = vrot.lane.b32.xlu0 %v2012, 8
        %v2092 = vpop.permute.xlu0 %2091
        %2093 = vrot.lane.b32.xlu0 %v2013, 8
        %v2094 = vpop.permute.xlu0 %2093
        %2095 = vrot.lane.b32.xlu0 %v2014, 8
        %v2096 = vpop.permute.xlu0 %2095
        %2097 = vrot.lane.b32.xlu0 %v2015, 8
        %v2098 = vpop.permute.xlu0 %2097
        %2099 = vrot.lane.b32.xlu0 %v2016, 8
        %v2100 = vpop.permute.xlu0 %2099
        %2101 = vrot.lane.b32.xlu0 %v2017, 8
        %v2102 = vpop.permute.xlu0 %2101
        %2103 = vrot.lane.b32.xlu0 %v2018, 8
        %v2104 = vpop.permute.xlu0 %2103
        %2105 = vrot.lane.b32.xlu0 %v2019, 8
        %v2106 = vpop.permute.xlu0 %2105
        %2107 = vrot.lane.b32.xlu0 %v2020, 8
        %v2108 = vpop.permute.xlu0 %2107
        %2109 = vrot.lane.b32.xlu0 %v2021, 8
        %v2110 = vpop.permute.xlu0 %2109
        %2111 = vrot.lane.b32.xlu0 %v2022, 8
        %v2112 = vpop.permute.xlu0 %2111
        %2113 = vrot.lane.b32.xlu0 %v2023, 8
        %v2114 = vpop.permute.xlu0 %2113
        %2115 = vrot.lane.b32.xlu0 %v2024, 8
        %v2116 = vpop.permute.xlu0 %2115
        %2117 = vrot.lane.b32.xlu0 %v2025, 8
        %v2118 = vpop.permute.xlu0 %2117
        %2119 = vrot.lane.b32.xlu0 %v2026, 8
        %v2120 = vpop.permute.xlu0 %2119
        %2121 = vrot.lane.b32.xlu0 %v2027, 8
        %v2122 = vpop.permute.xlu0 %2121
        %2123 = vrot.lane.b32.xlu0 %v2028, 8
        %v2124 = vpop.permute.xlu0 %2123
        %2157 = vst.msk [vmem:[#allocation3] sm:$0xff] %vm764, %v2062
        %2158 = vst.msk [vmem:[#allocation3 + $0x8] sm:$0xff] %vm764, %v2064
        %2159 = vst.msk [vmem:[#allocation3 + $0x10] sm:$0xff] %vm764, %v2066
        %2160 = vst.msk [vmem:[#allocation3 + $0x18] sm:$0xff] %vm764, %v2068
        %2161 = vst.msk [vmem:[#allocation3 + $0x20] sm:$0xff] %vm764, %v2070
        %2162 = vst.msk [vmem:[#allocation3 + $0x28] sm:$0xff] %vm764, %v2072
        %2163 = vst.msk [vmem:[#allocation3 + $0x30] sm:$0xff] %vm764, %v2074
        %2164 = vst.msk [vmem:[#allocation3 + $0x38] sm:$0xff] %vm764, %v2076
        %2165 = vst.msk [vmem:[#allocation3 + $0x40] sm:$0xff] %vm764, %v2078
        %2166 = vst.msk [vmem:[#allocation3 + $0x48] sm:$0xff] %vm764, %v2080
        %2167 = vst.msk [vmem:[#allocation3 + $0x50] sm:$0xff] %vm764, %v2082
        %2168 = vst.msk [vmem:[#allocation3 + $0x58] sm:$0xff] %vm764, %v2084
        %2169 = vst.msk [vmem:[#allocation3 + $0x60] sm:$0xff] %vm764, %v2086
        %2170 = vst.msk [vmem:[#allocation3 + $0x68] sm:$0xff] %vm764, %v2088
        %2171 = vst.msk [vmem:[#allocation3 + $0x70] sm:$0xff] %vm764, %v2090
        %2172 = vst.msk [vmem:[#allocation3 + $0x78] sm:$0xff] %vm764, %v2092
        %2173 = vst.msk [vmem:[#allocation3 + $0x80] sm:$0xff] %vm764, %v2094
        %2174 = vst.msk [vmem:[#allocation3 + $0x88] sm:$0xff] %vm764, %v2096
        %2175 = vst.msk [vmem:[#allocation3 + $0x90] sm:$0xff] %vm764, %v2098
        %2176 = vst.msk [vmem:[#allocation3 + $0x98] sm:$0xff] %vm764, %v2100
        %2177 = vst.msk [vmem:[#allocation3 + $0xa0] sm:$0xff] %vm764, %v2102
        %2178 = vst.msk [vmem:[#allocation3 + $0xa8] sm:$0xff] %vm764, %v2104
        %2179 = vst.msk [vmem:[#allocation3 + $0xb0] sm:$0xff] %vm764, %v2106
        %2180 = vst.msk [vmem:[#allocation3 + $0xb8] sm:$0xff] %vm764, %v2108
        %2181 = vst.msk [vmem:[#allocation3 + $0xc0] sm:$0xff] %vm764, %v2110
        %2182 = vst.msk [vmem:[#allocation3 + $0xc8] sm:$0xff] %vm764, %v2112
        %2183 = vst.msk [vmem:[#allocation3 + $0xd0] sm:$0xff] %vm764, %v2114
        %2184 = vst.msk [vmem:[#allocation3 + $0xd8] sm:$0xff] %vm764, %v2116
        %2185 = vst.msk [vmem:[#allocation3 + $0xe0] sm:$0xff] %vm764, %v2118
        %2186 = vst.msk [vmem:[#allocation3 + $0xe8] sm:$0xff] %vm764, %v2120
        %2187 = vst.msk [vmem:[#allocation3 + $0xf0] sm:$0xff] %vm764, %v2122
        %2188 = vst.msk [vmem:[#allocation3 + $0xf8] sm:$0xff] %vm764, %v2124
        %v2189 = vld [vmem:[#allocation3] sm:$0xff]
        %v2190 = vld [vmem:[#allocation3 + $0x8] sm:$0xff]
        %v2191 = vld [vmem:[#allocation3 + $0x10] sm:$0xff]
        %v2192 = vld [vmem:[#allocation3 + $0x18] sm:$0xff]
        %v2193 = vld [vmem:[#allocation3 + $0x20] sm:$0xff]
        %v2194 = vld [vmem:[#allocation3 + $0x28] sm:$0xff]
        %v2195 = vld [vmem:[#allocation3 + $0x30] sm:$0xff]
        %v2196 = vld [vmem:[#allocation3 + $0x38] sm:$0xff]
        %v2197 = vld [vmem:[#allocation3 + $0x40] sm:$0xff]
        %v2198 = vld [vmem:[#allocation3 + $0x48] sm:$0xff]
        %v2199 = vld [vmem:[#allocation3 + $0x50] sm:$0xff]
        %v2200 = vld [vmem:[#allocation3 + $0x58] sm:$0xff]
        %v2201 = vld [vmem:[#allocation3 + $0x60] sm:$0xff]
        %v2202 = vld [vmem:[#allocation3 + $0x68] sm:$0xff]
        %v2203 = vld [vmem:[#allocation3 + $0x70] sm:$0xff]
        %v2204 = vld [vmem:[#allocation3 + $0x78] sm:$0xff]
        %v2205 = vld [vmem:[#allocation3 + $0x80] sm:$0xff]
        %v2206 = vld [vmem:[#allocation3 + $0x88] sm:$0xff]
        %v2207 = vld [vmem:[#allocation3 + $0x90] sm:$0xff]
        %v2208 = vld [vmem:[#allocation3 + $0x98] sm:$0xff]
        %v2209 = vld [vmem:[#allocation3 + $0xa0] sm:$0xff]
        %v2210 = vld [vmem:[#allocation3 + $0xa8] sm:$0xff]
        %v2211 = vld [vmem:[#allocation3 + $0xb0] sm:$0xff]
        %v2212 = vld [vmem:[#allocation3 + $0xb8] sm:$0xff]
        %v2213 = vld [vmem:[#allocation3 + $0xc0] sm:$0xff]
        %v2214 = vld [vmem:[#allocation3 + $0xc8] sm:$0xff]
        %v2215 = vld [vmem:[#allocation3 + $0xd0] sm:$0xff]
        %v2216 = vld [vmem:[#allocation3 + $0xd8] sm:$0xff]
        %v2217 = vld [vmem:[#allocation3 + $0xe0] sm:$0xff]
        %v2218 = vld [vmem:[#allocation3 + $0xe8] sm:$0xff]
        %v2219 = vld [vmem:[#allocation3 + $0xf0] sm:$0xff]
        %v2220 = vld [vmem:[#allocation3 + $0xf8] sm:$0xff]
        %s2221 = scalar_lea.vmem %s1, 32
        %v2222 = vld [vmem:[%s2221] sm:$0xff]
        %v2223 = vld [vmem:[%s2221 + $0x8] sm:$0xf]
        %v2225 = vsel %vm1314, %v2189, 0
        %v2228 = vsel %vm1314, %v2190, 0
        %v2231 = vsel %vm1314, %v2191, 0
        %v2234 = vsel %vm1314, %v2192, 0
        %v2237 = vsel %vm1314, %v2193, 0
        %v2240 = vsel %vm1314, %v2194, 0
        %v2243 = vsel %vm1314, %v2195, 0
        %v2246 = vsel %vm1314, %v2196, 0
        %v2249 = vsel %vm1314, %v2197, 0
        %v2252 = vsel %vm1314, %v2198, 0
        %v2255 = vsel %vm1314, %v2199, 0
        %v2258 = vsel %vm1314, %v2200, 0
        %v2261 = vsel %vm1314, %v2201, 0
        %v2264 = vsel %vm1314, %v2202, 0
        %v2267 = vsel %vm1314, %v2203, 0
        %v2270 = vsel %vm1314, %v2204, 0
        %v2273 = vsel %vm1314, %v2205, 0
        %v2276 = vsel %vm1314, %v2206, 0
        %v2279 = vsel %vm1314, %v2207, 0
        %v2282 = vsel %vm1314, %v2208, 0
        %v2285 = vsel %vm1314, %v2209, 0
        %v2288 = vsel %vm1314, %v2210, 0
        %v2291 = vsel %vm1314, %v2211, 0
        %v2294 = vsel %vm1314, %v2212, 0
        %v2297 = vsel %vm1314, %v2213, 0
        %v2300 = vsel %vm1314, %v2214, 0
        %v2303 = vsel %vm1314, %v2215, 0
        %v2306 = vsel %vm1314, %v2216, 0
        %v2309 = vsel %vm1314, %v2217, 0
        %v2312 = vsel %vm1314, %v2218, 0
        %v2315 = vsel %vm1314, %v2219, 0
        %v2318 = vsel %vm1314, %v2220, 0
        %v2321 = vsel %vm1411, %v2223, 0
        %2323 = vmatpush.msra.mxu0 0.0
        %2324 = vmatpush.msra.mxu0 0.0
        %2325 = vmatpush.msra.mxu0 0.0
        %2326 = vmatpush.msra.mxu0 0.0
        %2327 = vmatpush.msra.mxu0 0.0
        %2328 = vmatpush.msra.mxu0 0.0
        %2329 = vmatpush.msra.mxu0 0.0
        %2330 = vmatpush.msra.mxu0 0.0
        %2331 = vmatpush.msra.mxu0 0.0
        %2332 = vmatpush.msra.mxu0 0.0
        %2333 = vmatpush.msra.mxu0 0.0
        %2334 = vmatpush.msra.mxu0 0.0
        %2335 = vmatpush.msra.mxu0 0.0
        %2336 = vmatpush.msra.mxu0 0.0
        %2337 = vmatpush.msra.mxu0 %v2321
        %2338 = vmatpush.msra.mxu0 %v2222
        %2339 = vmatmul.f32.gmra.mxu0 %v2225
        %v2340 = vpop.f32.mrf.mxu0
        %v2341 = vadd.f32 0.0, %v2340
        %2342 = vmatmul.f32.gmra.mxu0 %v2228
        %v2343 = vpop.f32.mrf.mxu0
        %v2344 = vadd.f32 0.0, %v2343
        %2345 = vmatmul.f32.gmra.mxu0 %v2231
        %v2346 = vpop.f32.mrf.mxu0
        %v2347 = vadd.f32 0.0, %v2346
        %2348 = vmatmul.f32.gmra.mxu0 %v2234
        %v2349 = vpop.f32.mrf.mxu0
        %v2350 = vadd.f32 0.0, %v2349
        %2351 = vmatmul.f32.gmra.mxu0 %v2237
        %v2352 = vpop.f32.mrf.mxu0
        %v2353 = vadd.f32 0.0, %v2352
        %2354 = vmatmul.f32.gmra.mxu0 %v2240
        %v2355 = vpop.f32.mrf.mxu0
        %v2356 = vadd.f32 0.0, %v2355
        %2357 = vmatmul.f32.gmra.mxu0 %v2243
        %v2358 = vpop.f32.mrf.mxu0
        %v2359 = vadd.f32 0.0, %v2358
        %2360 = vmatmul.f32.gmra.mxu0 %v2246
        %v2361 = vpop.f32.mrf.mxu0
        %v2362 = vadd.f32 0.0, %v2361
        %2363 = vmatmul.f32.gmra.mxu0 %v2249
        %v2364 = vpop.f32.mrf.mxu0
        %v2365 = vadd.f32 0.0, %v2364
        %2366 = vmatmul.f32.gmra.mxu0 %v2252
        %v2367 = vpop.f32.mrf.mxu0
        %v2368 = vadd.f32 0.0, %v2367
        %2369 = vmatmul.f32.gmra.mxu0 %v2255
        %v2370 = vpop.f32.mrf.mxu0
        %v2371 = vadd.f32 0.0, %v2370
        %2372 = vmatmul.f32.gmra.mxu0 %v2258
        %v2373 = vpop.f32.mrf.mxu0
        %v2374 = vadd.f32 0.0, %v2373
        %2375 = vmatmul.f32.gmra.mxu0 %v2261
        %v2376 = vpop.f32.mrf.mxu0
        %v2377 = vadd.f32 0.0, %v2376
        %2378 = vmatmul.f32.gmra.mxu0 %v2264
        %v2379 = vpop.f32.mrf.mxu0
        %v2380 = vadd.f32 0.0, %v2379
        %2381 = vmatmul.f32.gmra.mxu0 %v2267
        %v2382 = vpop.f32.mrf.mxu0
        %v2383 = vadd.f32 0.0, %v2382
        %2384 = vmatmul.f32.gmra.mxu0 %v2270
        %v2385 = vpop.f32.mrf.mxu0
        %v2386 = vadd.f32 0.0, %v2385
        %2387 = vmatmul.f32.gmra.mxu0 %v2273
        %v2388 = vpop.f32.mrf.mxu0
        %v2389 = vadd.f32 0.0, %v2388
        %2390 = vmatmul.f32.gmra.mxu0 %v2276
        %v2391 = vpop.f32.mrf.mxu0
        %v2392 = vadd.f32 0.0, %v2391
        %2393 = vmatmul.f32.gmra.mxu0 %v2279
        %v2394 = vpop.f32.mrf.mxu0
        %v2395 = vadd.f32 0.0, %v2394
        %2396 = vmatmul.f32.gmra.mxu0 %v2282
        %v2397 = vpop.f32.mrf.mxu0
        %v2398 = vadd.f32 0.0, %v2397
        %2399 = vmatmul.f32.gmra.mxu0 %v2285
        %v2400 = vpop.f32.mrf.mxu0
        %v2401 = vadd.f32 0.0, %v2400
        %2402 = vmatmul.f32.gmra.mxu0 %v2288
        %v2403 = vpop.f32.mrf.mxu0
        %v2404 = vadd.f32 0.0, %v2403
        %2405 = vmatmul.f32.gmra.mxu0 %v2291
        %v2406 = vpop.f32.mrf.mxu0
        %v2407 = vadd.f32 0.0, %v2406
        %2408 = vmatmul.f32.gmra.mxu0 %v2294
        %v2409 = vpop.f32.mrf.mxu0
        %v2410 = vadd.f32 0.0, %v2409
        %2411 = vmatmul.f32.gmra.mxu0 %v2297
        %v2412 = vpop.f32.mrf.mxu0
        %v2413 = vadd.f32 0.0, %v2412
        %2414 = vmatmul.f32.gmra.mxu0 %v2300
        %v2415 = vpop.f32.mrf.mxu0
        %v2416 = vadd.f32 0.0, %v2415
        %2417 = vmatmul.f32.gmra.mxu0 %v2303
        %v2418 = vpop.f32.mrf.mxu0
        %v2419 = vadd.f32 0.0, %v2418
        %2420 = vmatmul.f32.gmra.mxu0 %v2306
        %v2421 = vpop.f32.mrf.mxu0
        %v2422 = vadd.f32 0.0, %v2421
        %2423 = vmatmul.f32.gmra.mxu0 %v2309
        %v2424 = vpop.f32.mrf.mxu0
        %v2425 = vadd.f32 0.0, %v2424
        %2426 = vmatmul.f32.gmra.mxu0 %v2312
        %v2427 = vpop.f32.mrf.mxu0
        %v2428 = vadd.f32 0.0, %v2427
        %2429 = vmatmul.f32.gmra.mxu0 %v2315
        %v2430 = vpop.f32.mrf.mxu0
        %v2431 = vadd.f32 0.0, %v2430
        %2432 = vmatmul.f32.gmra.mxu0 %v2318
        %v2433 = vpop.f32.mrf.mxu0
        %v2434 = vadd.f32 0.0, %v2433
        %2435 = vdwg.mxu0
        %v2436 = vadd.f32 %v1645, %v2341
        %v2437 = vadd.f32 %v1648, %v2344
        %v2438 = vadd.f32 %v1651, %v2347
        %v2439 = vadd.f32 %v1654, %v2350
        %v2440 = vadd.f32 %v1657, %v2353
        %v2441 = vadd.f32 %v1660, %v2356
        %v2442 = vadd.f32 %v1663, %v2359
        %v2443 = vadd.f32 %v1666, %v2362
        %v2444 = vadd.f32 %v1669, %v2365
        %v2445 = vadd.f32 %v1672, %v2368
        %v2446 = vadd.f32 %v1675, %v2371
        %v2447 = vadd.f32 %v1678, %v2374
        %v2448 = vadd.f32 %v1681, %v2377
        %v2449 = vadd.f32 %v1684, %v2380
        %v2450 = vadd.f32 %v1687, %v2383
        %v2451 = vadd.f32 %v1690, %v2386
        %v2452 = vadd.f32 %v1693, %v2389
        %v2453 = vadd.f32 %v1696, %v2392
        %v2454 = vadd.f32 %v1699, %v2395
        %v2455 = vadd.f32 %v1702, %v2398
        %v2456 = vadd.f32 %v1705, %v2401
        %v2457 = vadd.f32 %v1708, %v2404
        %v2458 = vadd.f32 %v1711, %v2407
        %v2459 = vadd.f32 %v1714, %v2410
        %v2460 = vadd.f32 %v1717, %v2413
        %v2461 = vadd.f32 %v1720, %v2416
        %v2462 = vadd.f32 %v1723, %v2419
        %v2463 = vadd.f32 %v1726, %v2422
        %v2464 = vadd.f32 %v1729, %v2425
        %v2465 = vadd.f32 %v1732, %v2428
        %v2466 = vadd.f32 %v1735, %v2431
        %v2467 = vadd.f32 %v1738, %v2434
        %v2468 = vsel %vm236, %v2436, 0.0
        %v2469 = vsel %vm236, %v2437, 0.0
        %v2470 = vadd.f32 %v2468, %v2469
        %v2471 = vsel %vm236, %v2438, 0.0
        %v2472 = vadd.f32 %v2470, %v2471
        %v2473 = vsel %vm236, %v2439, 0.0
        %v2474 = vadd.f32 %v2472, %v2473
        %v2475 = vsel %vm236, %v2440, 0.0
        %v2476 = vadd.f32 %v2474, %v2475
        %v2477 = vsel %vm236, %v2441, 0.0
        %v2478 = vadd.f32 %v2476, %v2477
        %v2479 = vsel %vm236, %v2442, 0.0
        %v2480 = vadd.f32 %v2478, %v2479
        %v2481 = vsel %vm236, %v2443, 0.0
        %v2482 = vadd.f32 %v2480, %v2481
        %v2483 = vsel %vm236, %v2444, 0.0
        %v2484 = vadd.f32 %v2482, %v2483
        %v2485 = vsel %vm236, %v2445, 0.0
        %v2486 = vadd.f32 %v2484, %v2485
        %v2487 = vsel %vm236, %v2446, 0.0
        %v2488 = vadd.f32 %v2486, %v2487
        %v2489 = vsel %vm236, %v2447, 0.0
        %v2490 = vadd.f32 %v2488, %v2489
        %v2491 = vsel %vm236, %v2448, 0.0
        %v2492 = vadd.f32 %v2490, %v2491
        %v2493 = vsel %vm236, %v2449, 0.0
        %v2494 = vadd.f32 %v2492, %v2493
        %v2495 = vsel %vm236, %v2450, 0.0
        %v2496 = vadd.f32 %v2494, %v2495
        %v2497 = vsel %vm236, %v2451, 0.0
        %v2498 = vadd.f32 %v2496, %v2497
        %v2499 = vsel %vm236, %v2452, 0.0
        %v2500 = vadd.f32 %v2498, %v2499
        %v2501 = vsel %vm236, %v2453, 0.0
        %v2502 = vadd.f32 %v2500, %v2501
        %v2503 = vsel %vm236, %v2454, 0.0
        %v2504 = vadd.f32 %v2502, %v2503
        %v2505 = vsel %vm236, %v2455, 0.0
        %v2506 = vadd.f32 %v2504, %v2505
        %v2507 = vsel %vm236, %v2456, 0.0
        %v2508 = vadd.f32 %v2506, %v2507
        %v2509 = vsel %vm236, %v2457, 0.0
        %v2510 = vadd.f32 %v2508, %v2509
        %v2511 = vsel %vm236, %v2458, 0.0
        %v2512 = vadd.f32 %v2510, %v2511
        %v2513 = vsel %vm236, %v2459, 0.0
        %v2514 = vadd.f32 %v2512, %v2513
        %v2515 = vsel %vm236, %v2460, 0.0
        %v2516 = vadd.f32 %v2514, %v2515
        %v2517 = vsel %vm236, %v2461, 0.0
        %v2518 = vadd.f32 %v2516, %v2517
        %v2519 = vsel %vm236, %v2462, 0.0
        %v2520 = vadd.f32 %v2518, %v2519
        %v2521 = vsel %vm236, %v2463, 0.0
        %v2522 = vadd.f32 %v2520, %v2521
        %v2523 = vsel %vm236, %v2464, 0.0
        %v2524 = vadd.f32 %v2522, %v2523
        %v2525 = vsel %vm236, %v2465, 0.0
        %v2526 = vadd.f32 %v2524, %v2525
        %v2527 = vsel %vm236, %v2466, 0.0
        %v2528 = vadd.f32 %v2526, %v2527
        %v2529 = vsel %vm236, %v2467, 0.0
        %v2530 = vadd.f32 %v2528, %v2529
        %v2531 = vrot.slane %v2530, 4
        %v2532 = vadd.f32 %v2530, %v2531
        %v2533 = vrot.slane %v2532, 2
        %v2534 = vadd.f32 %v2532, %v2533
        %v2535 = vrot.slane %v2534, 1
        %v2536 = vadd.f32 %v2534, %v2535
        %v2537 = vmul.f32 %v2536, 0.00390625
        %v2538 = vsub.f32 %v2436, %v2537
        %v2539 = vsub.f32 %v2437, %v2537
        %v2540 = vsub.f32 %v2438, %v2537
        %v2541 = vsub.f32 %v2439, %v2537
        %v2542 = vsub.f32 %v2440, %v2537
        %v2543 = vsub.f32 %v2441, %v2537
        %v2544 = vsub.f32 %v2442, %v2537
        %v2545 = vsub.f32 %v2443, %v2537
        %v2546 = vsub.f32 %v2444, %v2537
        %v2547 = vsub.f32 %v2445, %v2537
        %v2548 = vsub.f32 %v2446, %v2537
        %v2549 = vsub.f32 %v2447, %v2537
        %v2550 = vsub.f32 %v2448, %v2537
        %v2551 = vsub.f32 %v2449, %v2537
        %v2552 = vsub.f32 %v2450, %v2537
        %v2553 = vsub.f32 %v2451, %v2537
        %v2554 = vsub.f32 %v2452, %v2537
        %v2555 = vsub.f32 %v2453, %v2537
        %v2556 = vsub.f32 %v2454, %v2537
        %v2557 = vsub.f32 %v2455, %v2537
        %v2558 = vsub.f32 %v2456, %v2537
        %v2559 = vsub.f32 %v2457, %v2537
        %v2560 = vsub.f32 %v2458, %v2537
        %v2561 = vsub.f32 %v2459, %v2537
        %v2562 = vsub.f32 %v2460, %v2537
        %v2563 = vsub.f32 %v2461, %v2537
        %v2564 = vsub.f32 %v2462, %v2537
        %v2565 = vsub.f32 %v2463, %v2537
        %v2566 = vsub.f32 %v2464, %v2537
        %v2567 = vsub.f32 %v2465, %v2537
        %v2568 = vsub.f32 %v2466, %v2537
        %v2569 = vsub.f32 %v2467, %v2537
        %v2570 = vmul.f32 %v2538, %v2538
        %v2571 = vmul.f32 %v2539, %v2539
        %v2572 = vmul.f32 %v2540, %v2540
        %v2573 = vmul.f32 %v2541, %v2541
        %v2574 = vmul.f32 %v2542, %v2542
        %v2575 = vmul.f32 %v2543, %v2543
        %v2576 = vmul.f32 %v2544, %v2544
        %v2577 = vmul.f32 %v2545, %v2545
        %v2578 = vmul.f32 %v2546, %v2546
        %v2579 = vmul.f32 %v2547, %v2547
        %v2580 = vmul.f32 %v2548, %v2548
        %v2581 = vmul.f32 %v2549, %v2549
        %v2582 = vmul.f32 %v2550, %v2550
        %v2583 = vmul.f32 %v2551, %v2551
        %v2584 = vmul.f32 %v2552, %v2552
        %v2585 = vmul.f32 %v2553, %v2553
        %v2586 = vmul.f32 %v2554, %v2554
        %v2587 = vmul.f32 %v2555, %v2555
        %v2588 = vmul.f32 %v2556, %v2556
        %v2589 = vmul.f32 %v2557, %v2557
        %v2590 = vmul.f32 %v2558, %v2558
        %v2591 = vmul.f32 %v2559, %v2559
        %v2592 = vmul.f32 %v2560, %v2560
        %v2593 = vmul.f32 %v2561, %v2561
        %v2594 = vmul.f32 %v2562, %v2562
        %v2595 = vmul.f32 %v2563, %v2563
        %v2596 = vmul.f32 %v2564, %v2564
        %v2597 = vmul.f32 %v2565, %v2565
        %v2598 = vmul.f32 %v2566, %v2566
        %v2599 = vmul.f32 %v2567, %v2567
        %v2600 = vmul.f32 %v2568, %v2568
        %v2601 = vmul.f32 %v2569, %v2569
        %v2602 = vsel %vm236, %v2570, 0.0
        %v2603 = vsel %vm236, %v2571, 0.0
        %v2604 = vadd.f32 %v2602, %v2603
        %v2605 = vsel %vm236, %v2572, 0.0
        %v2606 = vadd.f32 %v2604, %v2605
        %v2607 = vsel %vm236, %v2573, 0.0
        %v2608 = vadd.f32 %v2606, %v2607
        %v2609 = vsel %vm236, %v2574, 0.0
        %v2610 = vadd.f32 %v2608, %v2609
        %v2611 = vsel %vm236, %v2575, 0.0
        %v2612 = vadd.f32 %v2610, %v2611
        %v2613 = vsel %vm236, %v2576, 0.0
        %v2614 = vadd.f32 %v2612, %v2613
        %v2615 = vsel %vm236, %v2577, 0.0
        %v2616 = vadd.f32 %v2614, %v2615
        %v2617 = vsel %vm236, %v2578, 0.0
        %v2618 = vadd.f32 %v2616, %v2617
        %v2619 = vsel %vm236, %v2579, 0.0
        %v2620 = vadd.f32 %v2618, %v2619
        %v2621 = vsel %vm236, %v2580, 0.0
        %v2622 = vadd.f32 %v2620, %v2621
        %v2623 = vsel %vm236, %v2581, 0.0
        %v2624 = vadd.f32 %v2622, %v2623
        %v2625 = vsel %vm236, %v2582, 0.0
        %v2626 = vadd.f32 %v2624, %v2625
        %v2627 = vsel %vm236, %v2583, 0.0
        %v2628 = vadd.f32 %v2626, %v2627
        %v2629 = vsel %vm236, %v2584, 0.0
        %v2630 = vadd.f32 %v2628, %v2629
        %v2631 = vsel %vm236, %v2585, 0.0
        %v2632 = vadd.f32 %v2630, %v2631
        %v2633 = vsel %vm236, %v2586, 0.0
        %v2634 = vadd.f32 %v2632, %v2633
        %v2635 = vsel %vm236, %v2587, 0.0
        %v2636 = vadd.f32 %v2634, %v2635
        %v2637 = vsel %vm236, %v2588, 0.0
        %v2638 = vadd.f32 %v2636, %v2637
        %v2639 = vsel %vm236, %v2589, 0.0
        %v2640 = vadd.f32 %v2638, %v2639
        %v2641 = vsel %vm236, %v2590, 0.0
        %v2642 = vadd.f32 %v2640, %v2641
        %v2643 = vsel %vm236, %v2591, 0.0
        %v2644 = vadd.f32 %v2642, %v2643
        %v2645 = vsel %vm236, %v2592, 0.0
        %v2646 = vadd.f32 %v2644, %v2645
        %v2647 = vsel %vm236, %v2593, 0.0
        %v2648 = vadd.f32 %v2646, %v2647
        %v2649 = vsel %vm236, %v2594, 0.0
        %v2650 = vadd.f32 %v2648, %v2649
        %v2651 = vsel %vm236, %v2595, 0.0
        %v2652 = vadd.f32 %v2650, %v2651
        %v2653 = vsel %vm236, %v2596, 0.0
        %v2654 = vadd.f32 %v2652, %v2653
        %v2655 = vsel %vm236, %v2597, 0.0
        %v2656 = vadd.f32 %v2654, %v2655
        %v2657 = vsel %vm236, %v2598, 0.0
        %v2658 = vadd.f32 %v2656, %v2657
        %v2659 = vsel %vm236, %v2599, 0.0
        %v2660 = vadd.f32 %v2658, %v2659
        %v2661 = vsel %vm236, %v2600, 0.0
        %v2662 = vadd.f32 %v2660, %v2661
        %v2663 = vsel %vm236, %v2601, 0.0
        %v2664 = vadd.f32 %v2662, %v2663
        %v2665 = vrot.slane %v2664, 4
        %v2666 = vadd.f32 %v2664, %v2665
        %v2667 = vrot.slane %v2666, 2
        %v2668 = vadd.f32 %v2666, %v2667
        %v2669 = vrot.slane %v2668, 1
        %v2670 = vadd.f32 %v2668, %v2669
        %2671 = vst.msk [vmem:[%s225] sm:$0x1] %vm245, %v2537
        %2672 = vst.msk [vmem:[%s225 + $0x1] sm:$0x1] %vm245, %v2670
        %2673 = vst.msk [vmem:[%s235] sm:$0xff] %vm236, %v2436
        %2674 = vst.msk [vmem:[%s235 + $0x8] sm:$0xff] %vm236, %v2437
        %2675 = vst.msk [vmem:[%s235 + $0x10] sm:$0xff] %vm236, %v2438
        %2676 = vst.msk [vmem:[%s235 + $0x18] sm:$0xff] %vm236, %v2439
        %2677 = vst.msk [vmem:[%s235 + $0x20] sm:$0xff] %vm236, %v2440
        %2678 = vst.msk [vmem:[%s235 + $0x28] sm:$0xff] %vm236, %v2441
        %2679 = vst.msk [vmem:[%s235 + $0x30] sm:$0xff] %vm236, %v2442
        %2680 = vst.msk [vmem:[%s235 + $0x38] sm:$0xff] %vm236, %v2443
        %2681 = vst.msk [vmem:[%s235 + $0x40] sm:$0xff] %vm236, %v2444
        %2682 = vst.msk [vmem:[%s235 + $0x48] sm:$0xff] %vm236, %v2445
        %2683 = vst.msk [vmem:[%s235 + $0x50] sm:$0xff] %vm236, %v2446
        %2684 = vst.msk [vmem:[%s235 + $0x58] sm:$0xff] %vm236, %v2447
        %2685 = vst.msk [vmem:[%s235 + $0x60] sm:$0xff] %vm236, %v2448
        %2686 = vst.msk [vmem:[%s235 + $0x68] sm:$0xff] %vm236, %v2449
        %2687 = vst.msk [vmem:[%s235 + $0x70] sm:$0xff] %vm236, %v2450
        %2688 = vst.msk [vmem:[%s235 + $0x78] sm:$0xff] %vm236, %v2451
        %2689 = vst.msk [vmem:[%s235 + $0x80] sm:$0xff] %vm236, %v2452
        %2690 = vst.msk [vmem:[%s235 + $0x88] sm:$0xff] %vm236, %v2453
        %2691 = vst.msk [vmem:[%s235 + $0x90] sm:$0xff] %vm236, %v2454
        %2692 = vst.msk [vmem:[%s235 + $0x98] sm:$0xff] %vm236, %v2455
        %2693 = vst.msk [vmem:[%s235 + $0xa0] sm:$0xff] %vm236, %v2456
        %2694 = vst.msk [vmem:[%s235 + $0xa8] sm:$0xff] %vm236, %v2457
        %2695 = vst.msk [vmem:[%s235 + $0xb0] sm:$0xff] %vm236, %v2458
        %2696 = vst.msk [vmem:[%s235 + $0xb8] sm:$0xff] %vm236, %v2459
        %2697 = vst.msk [vmem:[%s235 + $0xc0] sm:$0xff] %vm236, %v2460
        %2698 = vst.msk [vmem:[%s235 + $0xc8] sm:$0xff] %vm236, %v2461
        %2699 = vst.msk [vmem:[%s235 + $0xd0] sm:$0xff] %vm236, %v2462
        %2700 = vst.msk [vmem:[%s235 + $0xd8] sm:$0xff] %vm236, %v2463
        %2701 = vst.msk [vmem:[%s235 + $0xe0] sm:$0xff] %vm236, %v2464
        %2702 = vst.msk [vmem:[%s235 + $0xe8] sm:$0xff] %vm236, %v2465
        %2703 = vst.msk [vmem:[%s235 + $0xf0] sm:$0xff] %vm236, %v2466
        %2704 = vst.msk [vmem:[%s235 + $0xf8] sm:$0xff] %vm236, %v2467
        %p2705 = scmp.lt.s32.totalorder %s20, 1
        %s2706 = scalar_select %p2705, %s20, 1
        %s2707 = smul.addr %s2706, 32
        %s2708 = smul.addr %s2707, 8
        %s2709 = scalar_lea.vmem %s4, %s2708
        %s2710 = sand.u32 %s143, 1
        %s2711 = scalar_lea.sflag [#allocation6], %s2710
        %s2712 = sand.u32 %s143, 1
        %s2713 = smul.addr %s2712, 2
        %s2714 = scalar_lea.vmem [#allocation5], %s2713
        // Predicated region
        $region37: #{tpu_custom_call.1} parent=35 // pred_check
          %p2715 = pneg %p127
        $region38: #{tpu_custom_call.1} parent=35 // pred_check_branch
          %2717 = sbr.rel (%p2715) target = $region40
        $region39: #{tpu_custom_call.1} parent=35 // pred_region
          _
        $region40: #{tpu_custom_call.1} parent=35 // pred_fallthru
          _
        // Predicated region
        $region41: #{tpu_custom_call.1} parent=35 // pred_check
          %p2718 = pneg %p153
        $region42: #{tpu_custom_call.1} parent=35 // pred_check_branch
          %2720 = sbr.rel (%p2718) target = $region44
        $region43: #{tpu_custom_call.1} parent=35 // pred_region
          %2722 = vsyncadd %s2711, 0
          %s2723 = smul.addr %s20, 2
          %s2724 = scalar_lea.hbm %s5, %s2723
          %s2726 = sshll.u32 %s2714, 4
          %s2727 = int_to_ptr.vmem [resolvable:$true] %s2726
          %s2728 = sshll.u32 %s2724, 4
          %s2729 = int_to_ptr.hbm [resolvable:$true] %s2728
          %2731 = dma.vmem_to_hbm [thread:$0]  %s2727, 32, %s2729, %s2711
        $region44: #{tpu_custom_call.1} parent=35 // pred_fallthru
          _
      $region36: #{tpu_custom_call.1} parent=5 // pred_fallthru
        _
      %p2732 = scmp.le.s32.totalorder 2, %s15
      // Predicated region
      $region45: #{tpu_custom_call.1} parent=5 // pred_check
        %p2733 = pneg %p2732
      $region46: #{tpu_custom_call.1} parent=5 // pred_check_branch
        %2735 = sbr.rel (%p2733) target = $region48
      $region47: #{tpu_custom_call.1} parent=5 // pred_region
        %s2736 = ssub.s32 %s15, 2
        // Predicated region
        $region49: #{tpu_custom_call.1} parent=47 // pred_check
          %p2737 = pneg %p133
        $region50: #{tpu_custom_call.1} parent=47 // pred_check_branch
          %2739 = sbr.rel (%p2737) target = $region52
        $region51: #{tpu_custom_call.1} parent=47 // pred_region
          %p2740 = scmp.lt.s32.totalorder %s21, 1
          %s2741 = scalar_select %p2740, %s21, 1
          %s2742 = smul.addr %s2741, 32
          %s2743 = smul.addr %s2742, 8
          %s2744 = scalar_lea.vmem %s4, %s2743
        $region52: #{tpu_custom_call.1} parent=47 // pred_fallthru
          _
        // Predicated region
        $region53: #{tpu_custom_call.1} parent=47 // pred_check
          %p2745 = pneg %p159
        $region54: #{tpu_custom_call.1} parent=47 // pred_check_branch
          %2747 = sbr.rel (%p2745) target = $region56
        $region55: #{tpu_custom_call.1} parent=47 // pred_region
          %s2748 = sand.u32 %s144, 1
          %s2749 = scalar_lea.sflag [#allocation6], %s2748
          %s2750 = sand.u32 %s144, 1
          %s2751 = smul.addr %s2750, 2
          %s2752 = scalar_lea.vmem [#allocation5], %s2751
          %2754 = dma.done %s2749, 32
        $region56: #{tpu_custom_call.1} parent=47 // pred_fallthru
          _
      $region48: #{tpu_custom_call.1} parent=5 // pred_fallthru
        _
    $region6: #{tpu_custom_call.1} parent=1 // loop_footer
      %s19 = sadd.s32 1, %s15
    $region7: #{tpu_custom_call.1} parent=1 // loop_footer_branch
      %14 = sbr.rel target = $region3
    $region8: #{tpu_custom_call.1} parent=1 // loop_exit
      _
    %2755 = vsyncpa [#allocation6], 1
    %s2756 = scalar_lea.sflag [#allocation6], 1
    %2757 = vsyncpa %s2756, 1

</llo_original>
